<compile_context>
chip_gen: v6e
topology: v6e:2x2x1
jax: 0.10.0
libtpu: 0.0.40
codegen_flags: <defaults>
</compile_context>

<pallas_src>
import functools

import jax
import jax.numpy as jnp
from jax.experimental import pallas as pl
from jax.experimental.pallas import tpu as pltpu


# ----------------------------- config ---------------------------------------
CONFIG = dict(
    input_size=4,
    hidden_size=32,
    output_size=2,
    n_layers=2,
    dropout_rate=0.1,   # unused at inference
)

LANES = 128             # lane-dense output slab width (minimum unmasked-store width)


def _round_up(n, m):
    return ((n + m - 1) // m) * m


def _choose_block_b(B):
    """Pick the batch tile so the grid has as few steps as possible.

    v5e/v6e have one TensorCore -> the grid is a serial loop; one big step wins.
    v7x: only split when B is large, and then into 4 even steps (>=2 per core so
    the auto-pipeline can overlap output DMA).  Multiple of 16 keeps the bf16
    output block tiling-legal.
    """
    if B <= 2048:
        return _round_up(max(B, 16), 16)
    return min(_round_up(pl.cdiv(B, 4), 16), 4096)


# ----------------------------- kernel ---------------------------------------
def _circle_kernel(n_hidden, out_col, *refs):
    """Fused forward pass for one batch tile.

    refs layout:
      x_ref,                                   # (TB, input_size)   f32
      (w, b) * n_hidden                        # w: (in, out) bf16, b: (1, out) f32
      w_comb_ref, b_comb_ref,                  # fused heads, lane-padded to LANES
      out_ref                                  # (TB, LANES) bf16: [out..., prob, 0-pad]
    """
    x_ref = refs[0]
    w_refs = refs[1:1 + 2 * n_hidden]
    w_comb_ref = refs[1 + 2 * n_hidden]
    b_comb_ref = refs[2 + 2 * n_hidden]
    out_ref = refs[3 + 2 * n_hidden]

    h = x_ref[...]
    # hidden stack: Linear -> ReLU -> (Dropout = identity), bf16 matmul, f32 accumulate
    for i in range(n_hidden):
        w = w_refs[2 * i][...]            # bf16 [in, out]
        b = w_refs[2 * i + 1][...]        # f32  [1, out]
        h = jnp.dot(h.astype(w.dtype), w, preferred_element_type=jnp.float32) + b
        h = jnp.maximum(h, 0.0)

    # fused regression + classifier heads: single matmul into a lane-dense slab
    w_c = w_comb_ref[...]                 # bf16 [hidden, LANES]
    comb = jnp.dot(h.astype(w_c.dtype), w_c,
                   preferred_element_type=jnp.float32) + b_comb_ref[...]

    # apply sigmoid only on the classifier lane (index out_col); others stay raw
    # (full-width EUP/VPU work, but it hides under the output DMA)
    lane = jax.lax.broadcasted_iota(jnp.int32, comb.shape, 1)
    comb = jnp.where(lane == out_col, jax.nn.sigmoid(comb), comb)

    out_ref[...] = comb.astype(out_ref.dtype)   # bf16 writeback halves the HBM stream


# ----------------------------- param prep (hoisted, run once) ----------------
def prepare_params(params, *, n_layers, lane_pad=LANES):
    """params: list of (W, b), PyTorch Linear convention W:[out, in], b:[out].

    Returns (flat_inputs, output_size):
      flat_inputs = [W1^T(bf16), b1(1,out,f32), ..., W_comb_pad(bf16), b_comb_pad(f32)]
    """
    n_hidden = 1 + n_layers
    flat = []
    for (W, b) in params[:n_hidden]:
        flat.append(jnp.asarray(W, jnp.float32).T.astype(jnp.bfloat16))
        flat.append(jnp.asarray(b, jnp.float32).reshape(1, -1))

    W_out, b_out = params[n_hidden]
    W_clf, b_clf = params[n_hidden + 1]
    W_out_T = jnp.asarray(W_out, jnp.float32).T          # [hidden, output_size]
    W_clf_T = jnp.asarray(W_clf, jnp.float32).T          # [output_size, 1]
    b_out = jnp.asarray(b_out, jnp.float32)              # [output_size]
    b_clf = jnp.asarray(b_clf, jnp.float32)              # [1]

    # fused heads: out = h @ W_out^T + b_out ; logit = out @ W_clf^T + b_clf
    W_comb = jnp.concatenate([W_out_T, W_out_T @ W_clf_T], axis=1)   # [hidden, out+1]
    b_comb = jnp.concatenate([b_out, b_out @ W_clf_T + b_clf])       # [out+1]

    hidden, out_cols = W_comb.shape
    W_comb_pad = (jnp.zeros((hidden, lane_pad), jnp.float32)
                  .at[:, :out_cols].set(W_comb).astype(jnp.bfloat16))
    b_comb_pad = jnp.zeros((1, lane_pad), jnp.float32).at[0, :out_cols].set(b_comb)
    flat.extend([W_comb_pad, b_comb_pad])

    output_size = W_out_T.shape[1]
    return tuple(flat), output_size


# ----------------------------- wrapper ---------------------------------------
def circle_regressor_forward(x, prepped, output_size, *, n_layers, block_b=None):
    """x: [B, input_size] f32; prepped from prepare_params()."""
    n_hidden = 1 + n_layers
    B, in_f = x.shape
    hidden = prepped[0].shape[1]

    if block_b is None:
        block_b = _choose_block_b(B)

    n_blocks = pl.cdiv(B, block_b)
    B_pad = n_blocks * block_b
    if B_pad != B:
        x = jnp.pad(x, ((0, B_pad - B), (0, 0)))

    in_specs = [pl.BlockSpec((block_b, in_f), lambda i: (i, 0))]          # streamed
    for arr in prepped:
        in_specs.append(pl.BlockSpec(arr.shape, lambda i: (0, 0)))        # VMEM-resident

    kernel = functools.partial(_circle_kernel, n_hidden, output_size)

    # advisory cost estimate so XLA schedules around this tiny custom call
    flops = 2 * B_pad * (in_f * hidden + n_layers * hidden * hidden + hidden * LANES)
    weight_bytes = int(sum(a.size * a.dtype.itemsize for a in prepped))
    bytes_accessed = B_pad * in_f * 4 + B_pad * LANES * 2 + weight_bytes
    cost = pl.CostEstimate(flops=flops, transcendentals=B_pad * LANES,
                           bytes_accessed=bytes_accessed)

    comb = pl.pallas_call(
        kernel,
        grid=(n_blocks,),
        in_specs=in_specs,
        out_specs=pl.BlockSpec((block_b, LANES), lambda i: (i, 0)),
        out_shape=jax.ShapeDtypeStruct((B_pad, LANES), jnp.bfloat16),
        compiler_params=pltpu.CompilerParams(
            dimension_semantics=("parallel",)),                           # v7x: 2 TCs
        cost_estimate=cost,
    )(x, *prepped)

    out = comb[:B, :output_size].astype(jnp.float32)
    prob = comb[:B, output_size:output_size + 1].astype(jnp.float32)
    # PyTorch: self.out(h).squeeze()  (note: for B==1 this also drops the batch dim)
    return jnp.squeeze(out), prob


# ----------------------------- param init ------------------------------------
def init_params(key, cfg):
    """Deterministic synthetic weights (PyTorch Linear shapes: W [out, in], b [out])."""
    sizes = [(cfg["hidden_size"], cfg["input_size"])]
    for _ in range(cfg["n_layers"]):
        sizes.append((cfg["hidden_size"], cfg["hidden_size"]))
    sizes.append((cfg["output_size"], cfg["hidden_size"]))   # regression head
    sizes.append((1, cfg["output_size"]))                    # classifier head

    params = []
    for (out_f, in_f) in sizes:
        key, kw, kb = jax.random.split(key, 3)
        bound = 1.0 / jnp.sqrt(in_f)
        W = jax.random.uniform(kw, (out_f, in_f), jnp.float32, -bound, bound)
        b = jax.random.uniform(kb, (out_f,), jnp.float32, -bound, bound)
        params.append((W, b))
    return params


# ----------------------------- references ------------------------------------
def reference_forward_f32(x, params, *, n_layers):
    """Exact PyTorch-module semantics in pure f32 JAX."""
    h = x
    for i in range(1 + n_layers):
        W, b = params[i]
        h = jnp.maximum(h @ W.T + b, 0.0)
    W_out, b_out = params[1 + n_layers]
    out = h @ W_out.T + b_out
    W_clf, b_clf = params[2 + n_layers]
    prob = jax.nn.sigmoid(out @ W_clf.T + b_clf)
    return jnp.squeeze(out), prob


def reference_forward_prepped(x, prepped, output_size, *, n_layers):
    """Precision-matched reference: same bf16-matmul / f32-accumulate / fused-head /
    bf16-output-slab math as the kernel."""
    n_hidden = 1 + n_layers
    h = x
    for i in range(n_hidden):
        w, b = prepped[2 * i], prepped[2 * i + 1]
        h = jnp.maximum(
            jnp.dot(h.astype(w.dtype), w, preferred_element_type=jnp.float32) + b, 0.0)
    w_c, b_c = prepped[2 * n_hidden], prepped[2 * n_hidden + 1]
    comb = jnp.dot(h.astype(w_c.dtype), w_c, preferred_element_type=jnp.float32) + b_c
    out = comb[:, :output_size]
    prob = jax.nn.sigmoid(comb[:, output_size:output_size + 1])
    # match the kernel's bf16 output-slab rounding
    out = out.astype(jnp.bfloat16).astype(jnp.float32)
    prob = prob.astype(jnp.bfloat16).astype(jnp.float32)
    return jnp.squeeze(out), prob


# ----------------------------- main -------------------------------------------
if __name__ == "__main__":
    cfg = CONFIG
    key = jax.random.PRNGKey(0)
    kx, kp = jax.random.split(key)

    # amortized-inference batch (the model itself is tiny: 4 -> 32 -> 32 -> 32 -> 2 -> 1)
    B = 512
    x = jax.random.normal(kx, (B, cfg["input_size"]), jnp.float32)
    params = init_params(kp, cfg)

    # hoisted once: transposes, head fusion, lane padding, bf16 cast
    prepped, output_size = prepare_params(params, n_layers=cfg["n_layers"])

    # block_b auto-selected: B=512 -> single grid step (no serial-loop overhead)
    out, prob = circle_regressor_forward(
        x, prepped, output_size, n_layers=cfg["n_layers"])
    out = jax.block_until_ready(out)
    prob = jax.block_until_ready(prob)

    # check against the precision-matched (bf16 matmul, fused-head, bf16 output) reference
    ref_out, ref_prob = reference_forward_prepped(
        x, prepped, output_size, n_layers=cfg["n_layers"])
    assert out.shape == ref_out.shape and prob.shape == ref_prob.shape
    assert jnp.allclose(out, ref_out, atol=2e-2, rtol=2e-2)
    assert jnp.allclose(prob, ref_prob, atol=2e-2, rtol=2e-2)

    # loose check against exact f32 module semantics (bf16 matmul + bf16 output tolerance)
    f32_out, f32_prob = reference_forward_f32(x, params, n_layers=cfg["n_layers"])
    assert jnp.allclose(out, f32_out, atol=5e-2, rtol=5e-2)
    assert jnp.allclose(prob, f32_prob, atol=5e-2, rtol=5e-2)

    print("KERNEL_OK")
</pallas_src>

<mosaic_0001>
module attributes {stable_mosaic.version = 11 : i64} {
  func.func @_circle_kernel(%arg0: i32, %arg1: memref<512x4xf32, #tpu.memory_space<vmem>>, %arg2: memref<4x32xbf16, #tpu.memory_space<vmem>>, %arg3: memref<1x32xf32, #tpu.memory_space<vmem>>, %arg4: memref<32x32xbf16, #tpu.memory_space<vmem>>, %arg5: memref<1x32xf32, #tpu.memory_space<vmem>>, %arg6: memref<32x32xbf16, #tpu.memory_space<vmem>>, %arg7: memref<1x32xf32, #tpu.memory_space<vmem>>, %arg8: memref<32x128xbf16, #tpu.memory_space<vmem>>, %arg9: memref<1x128xf32, #tpu.memory_space<vmem>>, %arg10: memref<512x128xbf16, #tpu.memory_space<vmem>>) attributes {dimension_semantics = [#tpu.dimension_semantics<parallel>], iteration_bounds = array<i64: 1>, scalar_prefetch = 0 : i64, scratch_operands = 0 : i64, tpu.core_type = #tpu.core_type<tc>, window_params = [{transform_indices = @transform_0, window_bounds = array<i64: 512, 4>}, {pipeline_mode = #tpu.pipeline_mode<synchronous>, transform_indices = @transform_1, window_bounds = array<i64: 4, 32>}, {pipeline_mode = #tpu.pipeline_mode<synchronous>, transform_indices = @transform_2, window_bounds = array<i64: 1, 32>}, {pipeline_mode = #tpu.pipeline_mode<synchronous>, transform_indices = @transform_3, window_bounds = array<i64: 32, 32>}, {pipeline_mode = #tpu.pipeline_mode<synchronous>, transform_indices = @transform_4, window_bounds = array<i64: 1, 32>}, {pipeline_mode = #tpu.pipeline_mode<synchronous>, transform_indices = @transform_5, window_bounds = array<i64: 32, 32>}, {pipeline_mode = #tpu.pipeline_mode<synchronous>, transform_indices = @transform_6, window_bounds = array<i64: 1, 32>}, {pipeline_mode = #tpu.pipeline_mode<synchronous>, transform_indices = @transform_7, window_bounds = array<i64: 32, 128>}, {pipeline_mode = #tpu.pipeline_mode<synchronous>, transform_indices = @transform_8, window_bounds = array<i64: 1, 128>}, {transform_indices = @transform_9, window_bounds = array<i64: 512, 128>}]} {
    %c0 = arith.constant 0 : index
    %c0_0 = arith.constant 0 : index
    %0 = vector.load %arg1[%c0, %c0_0] : memref<512x4xf32, #tpu.memory_space<vmem>>, vector<512x4xf32>
    %c0_1 = arith.constant 0 : index
    %c0_2 = arith.constant 0 : index
    %1 = vector.load %arg2[%c0_1, %c0_2] : memref<4x32xbf16, #tpu.memory_space<vmem>>, vector<4x32xbf16>
    %c0_3 = arith.constant 0 : index
    %c0_4 = arith.constant 0 : index
    %2 = vector.load %arg3[%c0_3, %c0_4] : memref<1x32xf32, #tpu.memory_space<vmem>>, vector<1x32xf32>
    %3 = arith.truncf %0 : vector<512x4xf32> to vector<512x4xbf16>
    %cst = arith.constant dense<0.000000e+00> : vector<512x32xf32>
    %4 = tpu.matmul %3, %1, %cst {dimension_numbers = #tpu.dot_dimension_numbers<[1], [0], [0], [1], [0, 0, 1, 1], [], []>} : vector<512x4xbf16>, vector<4x32xbf16>, vector<512x32xf32> -> vector<512x32xf32>
    %5 = vector.broadcast %2 : vector<1x32xf32> to vector<512x32xf32>
    %6 = arith.addf %4, %5 : vector<512x32xf32>
    %cst_5 = arith.constant 0.000000e+00 : f32
    %7 = vector.broadcast %cst_5 : f32 to vector<512x32xf32>
    %8 = arith.maximumf %6, %7 : vector<512x32xf32>
    %c0_6 = arith.constant 0 : index
    %c0_7 = arith.constant 0 : index
    %9 = vector.load %arg4[%c0_6, %c0_7] : memref<32x32xbf16, #tpu.memory_space<vmem>>, vector<32x32xbf16>
    %c0_8 = arith.constant 0 : index
    %c0_9 = arith.constant 0 : index
    %10 = vector.load %arg5[%c0_8, %c0_9] : memref<1x32xf32, #tpu.memory_space<vmem>>, vector<1x32xf32>
    %11 = arith.truncf %8 : vector<512x32xf32> to vector<512x32xbf16>
    %cst_10 = arith.constant dense<0.000000e+00> : vector<512x32xf32>
    %12 = tpu.matmul %11, %9, %cst_10 {dimension_numbers = #tpu.dot_dimension_numbers<[1], [0], [0], [1], [0, 0, 1, 1], [], []>} : vector<512x32xbf16>, vector<32x32xbf16>, vector<512x32xf32> -> vector<512x32xf32>
    %13 = vector.broadcast %10 : vector<1x32xf32> to vector<512x32xf32>
    %14 = arith.addf %12, %13 : vector<512x32xf32>
    %cst_11 = arith.constant 0.000000e+00 : f32
    %15 = vector.broadcast %cst_11 : f32 to vector<512x32xf32>
    %16 = arith.maximumf %14, %15 : vector<512x32xf32>
    %c0_12 = arith.constant 0 : index
    %c0_13 = arith.constant 0 : index
    %17 = vector.load %arg6[%c0_12, %c0_13] : memref<32x32xbf16, #tpu.memory_space<vmem>>, vector<32x32xbf16>
    %c0_14 = arith.constant 0 : index
    %c0_15 = arith.constant 0 : index
    %18 = vector.load %arg7[%c0_14, %c0_15] : memref<1x32xf32, #tpu.memory_space<vmem>>, vector<1x32xf32>
    %19 = arith.truncf %16 : vector<512x32xf32> to vector<512x32xbf16>
    %cst_16 = arith.constant dense<0.000000e+00> : vector<512x32xf32>
    %20 = tpu.matmul %19, %17, %cst_16 {dimension_numbers = #tpu.dot_dimension_numbers<[1], [0], [0], [1], [0, 0, 1, 1], [], []>} : vector<512x32xbf16>, vector<32x32xbf16>, vector<512x32xf32> -> vector<512x32xf32>
    %21 = vector.broadcast %18 : vector<1x32xf32> to vector<512x32xf32>
    %22 = arith.addf %20, %21 : vector<512x32xf32>
    %cst_17 = arith.constant 0.000000e+00 : f32
    %23 = vector.broadcast %cst_17 : f32 to vector<512x32xf32>
    %24 = arith.maximumf %22, %23 : vector<512x32xf32>
    %c0_18 = arith.constant 0 : index
    %c0_19 = arith.constant 0 : index
    %25 = vector.load %arg8[%c0_18, %c0_19] : memref<32x128xbf16, #tpu.memory_space<vmem>>, vector<32x128xbf16>
    %26 = arith.truncf %24 : vector<512x32xf32> to vector<512x32xbf16>
    %cst_20 = arith.constant dense<0.000000e+00> : vector<512x128xf32>
    %27 = tpu.matmul %26, %25, %cst_20 {dimension_numbers = #tpu.dot_dimension_numbers<[1], [0], [0], [1], [0, 0, 1, 1], [], []>} : vector<512x32xbf16>, vector<32x128xbf16>, vector<512x128xf32> -> vector<512x128xf32>
    %c0_21 = arith.constant 0 : index
    %c0_22 = arith.constant 0 : index
    %28 = vector.load %arg9[%c0_21, %c0_22] : memref<1x128xf32, #tpu.memory_space<vmem>>, vector<1x128xf32>
    %29 = vector.broadcast %28 : vector<1x128xf32> to vector<512x128xf32>
    %30 = arith.addf %27, %29 : vector<512x128xf32>
    %31 = tpu.iota {dimensions = array<i32: 1>} : vector<512x128xi32>
    %c2_i32 = arith.constant 2 : i32
    %32 = vector.broadcast %c2_i32 : i32 to vector<512x128xi32>
    %33 = arith.cmpi eq, %31, %32 : vector<512x128xi32>
    %34 = arith.negf %30 : vector<512x128xf32>
    %35 = math.exp %34 : vector<512x128xf32>
    %cst_23 = arith.constant 1.000000e+00 : f32
    %36 = vector.broadcast %cst_23 : f32 to vector<512x128xf32>
    %37 = arith.addf %36, %35 : vector<512x128xf32>
    %38 = arith.divf %36, %37 : vector<512x128xf32>
    %39 = arith.select %33, %38, %30 : vector<512x128xi1>, vector<512x128xf32>
    %40 = arith.truncf %39 : vector<512x128xf32> to vector<512x128xbf16>
    %c0_24 = arith.constant 0 : index
    %c0_25 = arith.constant 0 : index
    %41 = vector.load %arg10[%c0_24, %c0_25] : memref<512x128xbf16, #tpu.memory_space<vmem>>, vector<512x128xbf16>
    tpu.vector_store %arg10[%c0_24, %c0_25], %40 {strides = array<i32>} : memref<512x128xbf16, #tpu.memory_space<vmem>>, vector<512x128xbf16>,
    return
  }
  func.func @transform_0(%arg0: i32) -> (i32, i32) {
    %c0_i32 = arith.constant 0 : i32
    %c0_i32_0 = arith.constant 0 : i32
    return %arg0, %c0_i32 : i32, i32
  }
  func.func @transform_1(%arg0: i32) -> (i32, i32) {
    %c0_i32 = arith.constant 0 : i32
    %c0_i32_0 = arith.constant 0 : i32
    %c0_i32_1 = arith.constant 0 : i32
    return %c0_i32, %c0_i32_0 : i32, i32
  }
  func.func @transform_2(%arg0: i32) -> (i32, i32) {
    %c0_i32 = arith.constant 0 : i32
    %c0_i32_0 = arith.constant 0 : i32
    %c0_i32_1 = arith.constant 0 : i32
    return %c0_i32, %c0_i32_0 : i32, i32
  }
  func.func @transform_3(%arg0: i32) -> (i32, i32) {
    %c0_i32 = arith.constant 0 : i32
    %c0_i32_0 = arith.constant 0 : i32
    %c0_i32_1 = arith.constant 0 : i32
    return %c0_i32, %c0_i32_0 : i32, i32
  }
  func.func @transform_4(%arg0: i32) -> (i32, i32) {
    %c0_i32 = arith.constant 0 : i32
    %c0_i32_0 = arith.constant 0 : i32
    %c0_i32_1 = arith.constant 0 : i32
    return %c0_i32, %c0_i32_0 : i32, i32
  }
  func.func @transform_5(%arg0: i32) -> (i32, i32) {
    %c0_i32 = arith.constant 0 : i32
    %c0_i32_0 = arith.constant 0 : i32
    %c0_i32_1 = arith.constant 0 : i32
    return %c0_i32, %c0_i32_0 : i32, i32
  }
  func.func @transform_6(%arg0: i32) -> (i32, i32) {
    %c0_i32 = arith.constant 0 : i32
    %c0_i32_0 = arith.constant 0 : i32
    %c0_i32_1 = arith.constant 0 : i32
    return %c0_i32, %c0_i32_0 : i32, i32
  }
  func.func @transform_7(%arg0: i32) -> (i32, i32) {
    %c0_i32 = arith.constant 0 : i32
    %c0_i32_0 = arith.constant 0 : i32
    %c0_i32_1 = arith.constant 0 : i32
    return %c0_i32, %c0_i32_0 : i32, i32
  }
  func.func @transform_8(%arg0: i32) -> (i32, i32) {
    %c0_i32 = arith.constant 0 : i32
    %c0_i32_0 = arith.constant 0 : i32
    %c0_i32_1 = arith.constant 0 : i32
    return %c0_i32, %c0_i32_0 : i32, i32
  }
  func.func @transform_9(%arg0: i32) -> (i32, i32) {
    %c0_i32 = arith.constant 0 : i32
    %c0_i32_0 = arith.constant 0 : i32
    return %arg0, %c0_i32 : i32, i32
  }
}

</mosaic_0001>

<llo_original>
// kernel: tpu_custom_call.1
$region0: #{tpu_custom_call.1}
  #allocation0 [shape = 'u32[]', space=smem, size = 0x4, offset = 0x4, fixed_abs, tag = 'smem constant byte address 0x4 - core index']
  #allocation1 [shape = 'u32[144,128]{1,0:T(1,128)}', space=vmem, size = 0x12000, scoped, tag = 'internal scratch']
  %s0 = inlined_call_operand.vmem [shape: f32[512,4], index: 0, kind: input, shape index: {}]
  %s1 = inlined_call_operand.vmem [shape: bf16[4,32], index: 1, kind: input, shape index: {}]
  %s2 = inlined_call_operand.vmem [shape: f32[1,32], index: 2, kind: input, shape index: {}]
  %s3 = inlined_call_operand.vmem [shape: bf16[32,32], index: 3, kind: input, shape index: {}]
  %s4 = inlined_call_operand.vmem [shape: f32[1,32], index: 4, kind: input, shape index: {}]
  %s5 = inlined_call_operand.vmem [shape: bf16[32,32], index: 5, kind: input, shape index: {}]
  %s6 = inlined_call_operand.vmem [shape: f32[1,32], index: 6, kind: input, shape index: {}]
  %s7 = inlined_call_operand.vmem [shape: bf16[32,128], index: 7, kind: input, shape index: {}]
  %s8 = inlined_call_operand.vmem [shape: f32[1,128], index: 8, kind: input, shape index: {}]
  %s9 = inlined_call_operand.hbm [shape: bf16[512,128], index: 9, kind: output, shape index: {}]
  %s10 = sld [smem:[#allocation0]]
  $region46: #{tpu_custom_call.1} parent=0
    _
  %s12 = ssub.s32 1, %s10
  %s13 = scalar_select 0, %s12, %s10
  $region1: #{tpu_custom_call.1} parent=0
    #allocation2 [shape = 'u8[131072]{0}', space=vmem, size = 0x20000, scoped, tag = 'output window, operand 0, single buffered']
    #allocation3 [shape = 's32[1]{0}', space=sflag, size = 0x4, scoped, tag = 'scoped memory for tpu_custom_call.1']
    %14 = vsyncpa [#allocation3], 0
    // Predicated region
    $region2: #{tpu_custom_call.1} parent=1 // pred_check
      _
    $region3: #{tpu_custom_call.1} parent=1 // pred_check_branch
      %16 = sbr.rel (0) target = $region5
    $region4: #{tpu_custom_call.1} parent=1 // pred_region
      _
    $region5: #{tpu_custom_call.1} parent=1 // pred_fallthru
      _
    // Predicated region
    $region6: #{tpu_custom_call.1} parent=1 // pred_check
      _
    $region7: #{tpu_custom_call.1} parent=1 // pred_check_branch
      %18 = sbr.rel (0) target = $region9
    $region8: #{tpu_custom_call.1} parent=1 // pred_region
      _
    $region9: #{tpu_custom_call.1} parent=1 // pred_fallthru
      _
    // Predicated region
    $region10: #{tpu_custom_call.1} parent=1 // pred_check
      _
    $region11: #{tpu_custom_call.1} parent=1 // pred_check_branch
      %20 = sbr.rel (0) target = $region13
    $region12: #{tpu_custom_call.1} parent=1 // pred_region
      _
    $region13: #{tpu_custom_call.1} parent=1 // pred_fallthru
      _
    // Predicated region
    $region14: #{tpu_custom_call.1} parent=1 // pred_check
      _
    $region15: #{tpu_custom_call.1} parent=1 // pred_check_branch
      %22 = sbr.rel (0) target = $region17
    $region16: #{tpu_custom_call.1} parent=1 // pred_region
      _
    $region17: #{tpu_custom_call.1} parent=1 // pred_fallthru
      _
    // Predicated region
    $region18: #{tpu_custom_call.1} parent=1 // pred_check
      _
    $region19: #{tpu_custom_call.1} parent=1 // pred_check_branch
      %24 = sbr.rel (0) target = $region21
    $region20: #{tpu_custom_call.1} parent=1 // pred_region
      _
    $region21: #{tpu_custom_call.1} parent=1 // pred_fallthru
      _
    // Predicated region
    $region22: #{tpu_custom_call.1} parent=1 // pred_check
      _
    $region23: #{tpu_custom_call.1} parent=1 // pred_check_branch
      %26 = sbr.rel (0) target = $region25
    $region24: #{tpu_custom_call.1} parent=1 // pred_region
      _
    $region25: #{tpu_custom_call.1} parent=1 // pred_fallthru
      _
    // Predicated region
    $region26: #{tpu_custom_call.1} parent=1 // pred_check
      _
    $region27: #{tpu_custom_call.1} parent=1 // pred_check_branch
      %28 = sbr.rel (0) target = $region29
    $region28: #{tpu_custom_call.1} parent=1 // pred_region
      _
    $region29: #{tpu_custom_call.1} parent=1 // pred_fallthru
      _
    // Predicated region
    $region30: #{tpu_custom_call.1} parent=1 // pred_check
      _
    $region31: #{tpu_custom_call.1} parent=1 // pred_check_branch
      %30 = sbr.rel (0) target = $region33
    $region32: #{tpu_custom_call.1} parent=1 // pred_region
      _
    $region33: #{tpu_custom_call.1} parent=1 // pred_fallthru
      _
    // Predicated region
    $region34: #{tpu_custom_call.1} parent=1 // pred_check
      _
    $region35: #{tpu_custom_call.1} parent=1 // pred_check_branch
      %32 = sbr.rel (0) target = $region37
    $region36: #{tpu_custom_call.1} parent=1 // pred_region
      _
    $region37: #{tpu_custom_call.1} parent=1 // pred_fallthru
      _
    %v34 = vld [vmem:[%s0] sm:$0xff]
    %v35 = vld [vmem:[%s0 + $0x8] sm:$0xff]
    %v36 = vld [vmem:[%s0 + $0x10] sm:$0xff]
    %v37 = vld [vmem:[%s0 + $0x18] sm:$0xff]
    %v38 = vld [vmem:[%s0 + $0x20] sm:$0xff]
    %v39 = vld [vmem:[%s0 + $0x28] sm:$0xff]
    %v40 = vld [vmem:[%s0 + $0x30] sm:$0xff]
    %v41 = vld [vmem:[%s0 + $0x38] sm:$0xff]
    %v42 = vld [vmem:[%s0 + $0x40] sm:$0xff]
    %v43 = vld [vmem:[%s0 + $0x48] sm:$0xff]
    %v44 = vld [vmem:[%s0 + $0x50] sm:$0xff]
    %v45 = vld [vmem:[%s0 + $0x58] sm:$0xff]
    %v46 = vld [vmem:[%s0 + $0x60] sm:$0xff]
    %v47 = vld [vmem:[%s0 + $0x68] sm:$0xff]
    %v48 = vld [vmem:[%s0 + $0x70] sm:$0xff]
    %v49 = vld [vmem:[%s0 + $0x78] sm:$0xff]
    %v50 = vld [vmem:[%s0 + $0x80] sm:$0xff]
    %v51 = vld [vmem:[%s0 + $0x88] sm:$0xff]
    %v52 = vld [vmem:[%s0 + $0x90] sm:$0xff]
    %v53 = vld [vmem:[%s0 + $0x98] sm:$0xff]
    %v54 = vld [vmem:[%s0 + $0xa0] sm:$0xff]
    %v55 = vld [vmem:[%s0 + $0xa8] sm:$0xff]
    %v56 = vld [vmem:[%s0 + $0xb0] sm:$0xff]
    %v57 = vld [vmem:[%s0 + $0xb8] sm:$0xff]
    %v58 = vld [vmem:[%s0 + $0xc0] sm:$0xff]
    %v59 = vld [vmem:[%s0 + $0xc8] sm:$0xff]
    %v60 = vld [vmem:[%s0 + $0xd0] sm:$0xff]
    %v61 = vld [vmem:[%s0 + $0xd8] sm:$0xff]
    %v62 = vld [vmem:[%s0 + $0xe0] sm:$0xff]
    %v63 = vld [vmem:[%s0 + $0xe8] sm:$0xff]
    %v64 = vld [vmem:[%s0 + $0xf0] sm:$0xff]
    %v65 = vld [vmem:[%s0 + $0xf8] sm:$0xff]
    %v66 = vld [vmem:[%s0 + $0x100] sm:$0xff]
    %v67 = vld [vmem:[%s0 + $0x108] sm:$0xff]
    %v68 = vld [vmem:[%s0 + $0x110] sm:$0xff]
    %v69 = vld [vmem:[%s0 + $0x118] sm:$0xff]
    %v70 = vld [vmem:[%s0 + $0x120] sm:$0xff]
    %v71 = vld [vmem:[%s0 + $0x128] sm:$0xff]
    %v72 = vld [vmem:[%s0 + $0x130] sm:$0xff]
    %v73 = vld [vmem:[%s0 + $0x138] sm:$0xff]
    %v74 = vld [vmem:[%s0 + $0x140] sm:$0xff]
    %v75 = vld [vmem:[%s0 + $0x148] sm:$0xff]
    %v76 = vld [vmem:[%s0 + $0x150] sm:$0xff]
    %v77 = vld [vmem:[%s0 + $0x158] sm:$0xff]
    %v78 = vld [vmem:[%s0 + $0x160] sm:$0xff]
    %v79 = vld [vmem:[%s0 + $0x168] sm:$0xff]
    %v80 = vld [vmem:[%s0 + $0x170] sm:$0xff]
    %v81 = vld [vmem:[%s0 + $0x178] sm:$0xff]
    %v82 = vld [vmem:[%s0 + $0x180] sm:$0xff]
    %v83 = vld [vmem:[%s0 + $0x188] sm:$0xff]
    %v84 = vld [vmem:[%s0 + $0x190] sm:$0xff]
    %v85 = vld [vmem:[%s0 + $0x198] sm:$0xff]
    %v86 = vld [vmem:[%s0 + $0x1a0] sm:$0xff]
    %v87 = vld [vmem:[%s0 + $0x1a8] sm:$0xff]
    %v88 = vld [vmem:[%s0 + $0x1b0] sm:$0xff]
    %v89 = vld [vmem:[%s0 + $0x1b8] sm:$0xff]
    %v90 = vld [vmem:[%s0 + $0x1c0] sm:$0xff]
    %v91 = vld [vmem:[%s0 + $0x1c8] sm:$0xff]
    %v92 = vld [vmem:[%s0 + $0x1d0] sm:$0xff]
    %v93 = vld [vmem:[%s0 + $0x1d8] sm:$0xff]
    %v94 = vld [vmem:[%s0 + $0x1e0] sm:$0xff]
    %v95 = vld [vmem:[%s0 + $0x1e8] sm:$0xff]
    %v96 = vld [vmem:[%s0 + $0x1f0] sm:$0xff]
    %v97 = vld [vmem:[%s0 + $0x1f8] sm:$0xff]
    %v98 = vld [vmem:[%s1] sm:$0x3]
    %v99 = vld [vmem:[%s2] sm:$0x1]
    %v100 = vpack.c.bf16 %v35, %v34
    %v101 = vpack.c.bf16 %v37, %v36
    %v102 = vpack.c.bf16 %v39, %v38
    %v103 = vpack.c.bf16 %v41, %v40
    %v104 = vpack.c.bf16 %v43, %v42
    %v105 = vpack.c.bf16 %v45, %v44
    %v106 = vpack.c.bf16 %v47, %v46
    %v107 = vpack.c.bf16 %v49, %v48
    %v108 = vpack.c.bf16 %v51, %v50
    %v109 = vpack.c.bf16 %v53, %v52
    %v110 = vpack.c.bf16 %v55, %v54
    %v111 = vpack.c.bf16 %v57, %v56
    %v112 = vpack.c.bf16 %v59, %v58
    %v113 = vpack.c.bf16 %v61, %v60
    %v114 = vpack.c.bf16 %v63, %v62
    %v115 = vpack.c.bf16 %v65, %v64
    %v116 = vpack.c.bf16 %v67, %v66
    %v117 = vpack.c.bf16 %v69, %v68
    %v118 = vpack.c.bf16 %v71, %v70
    %v119 = vpack.c.bf16 %v73, %v72
    %v120 = vpack.c.bf16 %v75, %v74
    %v121 = vpack.c.bf16 %v77, %v76
    %v122 = vpack.c.bf16 %v79, %v78
    %v123 = vpack.c.bf16 %v81, %v80
    %v124 = vpack.c.bf16 %v83, %v82
    %v125 = vpack.c.bf16 %v85, %v84
    %v126 = vpack.c.bf16 %v87, %v86
    %v127 = vpack.c.bf16 %v89, %v88
    %v128 = vpack.c.bf16 %v91, %v90
    %v129 = vpack.c.bf16 %v93, %v92
    %v130 = vpack.c.bf16 %v95, %v94
    %v131 = vpack.c.bf16 %v97, %v96
    %v133 = vlaneseq
    %v134 = vshrl.u32 %v133, 7
    %v135 = vsub.s32 0, %v134
    %v136 = vrot.slane %v99, %v135
    %vm138 = vcmask 31744
    %v140 = vsel %vm138, %v100, 0
    %v143 = vsel %vm138, %v101, 0
    %v146 = vsel %vm138, %v102, 0
    %v149 = vsel %vm138, %v103, 0
    %v152 = vsel %vm138, %v104, 0
    %v155 = vsel %vm138, %v105, 0
    %v158 = vsel %vm138, %v106, 0
    %v161 = vsel %vm138, %v107, 0
    %v164 = vsel %vm138, %v108, 0
    %v167 = vsel %vm138, %v109, 0
    %v170 = vsel %vm138, %v110, 0
    %v173 = vsel %vm138, %v111, 0
    %v176 = vsel %vm138, %v112, 0
    %v179 = vsel %vm138, %v113, 0
    %v182 = vsel %vm138, %v114, 0
    %v185 = vsel %vm138, %v115, 0
    %v188 = vsel %vm138, %v116, 0
    %v191 = vsel %vm138, %v117, 0
    %v194 = vsel %vm138, %v118, 0
    %v197 = vsel %vm138, %v119, 0
    %v200 = vsel %vm138, %v120, 0
    %v203 = vsel %vm138, %v121, 0
    %v206 = vsel %vm138, %v122, 0
    %v209 = vsel %vm138, %v123, 0
    %v212 = vsel %vm138, %v124, 0
    %v215 = vsel %vm138, %v125, 0
    %v218 = vsel %vm138, %v126, 0
    %v221 = vsel %vm138, %v127, 0
    %v224 = vsel %vm138, %v128, 0
    %v227 = vsel %vm138, %v129, 0
    %v230 = vsel %vm138, %v130, 0
    %v233 = vsel %vm138, %v131, 0
    %vm235 = vcmask 1041408
    %v237 = vsel %vm235, %v98, 0
    %239 = vmatprep.subr.bf16.mxu0 0
    %240 = vmatpush1.bf16.msra.mxu0 0
    %241 = vmatprep.subr.bf16.mxu0 0
    %242 = vmatpush1.bf16.msra.mxu0 0
    %243 = vmatprep.subr.bf16.mxu0 0
    %244 = vmatpush1.bf16.msra.mxu0 0
    %245 = vmatprep.subr.bf16.mxu0 0
    %246 = vmatpush1.bf16.msra.mxu0 0
    %247 = vmatprep.subr.bf16.mxu0 0
    %248 = vmatpush1.bf16.msra.mxu0 0
    %249 = vmatprep.subr.bf16.mxu0 0
    %250 = vmatpush1.bf16.msra.mxu0 0
    %251 = vmatprep.subr.bf16.mxu0 0
    %252 = vmatpush1.bf16.msra.mxu0 0
    %253 = vmatprep.subr.bf16.mxu0 0
    %254 = vmatpush1.bf16.msra.mxu0 %v237
    %255 = vmatprep.subr.bf16.mxu0 0
    %256 = vmatpush2.bf16.msra.mxu0 0
    %257 = vmatprep.subr.bf16.mxu0 0
    %258 = vmatpush2.bf16.msra.mxu0 0
    %259 = vmatprep.subr.bf16.mxu0 0
    %260 = vmatpush2.bf16.msra.mxu0 0
    %261 = vmatprep.subr.bf16.mxu0 0
    %262 = vmatpush2.bf16.msra.mxu0 0
    %263 = vmatprep.subr.bf16.mxu0 0
    %264 = vmatpush2.bf16.msra.mxu0 0
    %265 = vmatprep.subr.bf16.mxu0 0
    %266 = vmatpush2.bf16.msra.mxu0 0
    %267 = vmatprep.subr.bf16.mxu0 0
    %268 = vmatpush2.bf16.msra.mxu0 0
    %269 = vmatprep.subr.bf16.mxu0 0
    %270 = vmatpush2.bf16.msra.mxu0 0
    %271 = vmatprep.mubr.bf16.mxu0 0
    %272 = vmatmul.mubr.bf16.gmra.mxu0 %v140
    %v273 = vpop.f32.mrf.mxu0
    %v274 = vadd.f32 %v136, %v273
    %v275 = vpop.f32.mrf.mxu0
    %v276 = vpop.f32.mrf.mxu0
    %v277 = vadd.f32 %v136, %v276
    %v278 = vpop.f32.mrf.mxu0
    %279 = vmatprep.mubr.bf16.mxu0 0
    %280 = vmatmul.mubr.bf16.gmra.mxu0 %v143
    %v281 = vpop.f32.mrf.mxu0
    %v282 = vadd.f32 %v136, %v281
    %v283 = vpop.f32.mrf.mxu0
    %v284 = vpop.f32.mrf.mxu0
    %v285 = vadd.f32 %v136, %v284
    %v286 = vpop.f32.mrf.mxu0
    %287 = vmatprep.mubr.bf16.mxu0 0
    %288 = vmatmul.mubr.bf16.gmra.mxu0 %v146
    %v289 = vpop.f32.mrf.mxu0
    %v290 = vadd.f32 %v136, %v289
    %v291 = vpop.f32.mrf.mxu0
    %v292 = vpop.f32.mrf.mxu0
    %v293 = vadd.f32 %v136, %v292
    %v294 = vpop.f32.mrf.mxu0
    %295 = vmatprep.mubr.bf16.mxu0 0
    %296 = vmatmul.mubr.bf16.gmra.mxu0 %v149
    %v297 = vpop.f32.mrf.mxu0
    %v298 = vadd.f32 %v136, %v297
    %v299 = vpop.f32.mrf.mxu0
    %v300 = vpop.f32.mrf.mxu0
    %v301 = vadd.f32 %v136, %v300
    %v302 = vpop.f32.mrf.mxu0
    %303 = vmatprep.mubr.bf16.mxu0 0
    %304 = vmatmul.mubr.bf16.gmra.mxu0 %v152
    %v305 = vpop.f32.mrf.mxu0
    %v306 = vadd.f32 %v136, %v305
    %v307 = vpop.f32.mrf.mxu0
    %v308 = vpop.f32.mrf.mxu0
    %v309 = vadd.f32 %v136, %v308
    %v310 = vpop.f32.mrf.mxu0
    %311 = vmatprep.mubr.bf16.mxu0 0
    %312 = vmatmul.mubr.bf16.gmra.mxu0 %v155
    %v313 = vpop.f32.mrf.mxu0
    %v314 = vadd.f32 %v136, %v313
    %v315 = vpop.f32.mrf.mxu0
    %v316 = vpop.f32.mrf.mxu0
    %v317 = vadd.f32 %v136, %v316
    %v318 = vpop.f32.mrf.mxu0
    %319 = vmatprep.mubr.bf16.mxu0 0
    %320 = vmatmul.mubr.bf16.gmra.mxu0 %v158
    %v321 = vpop.f32.mrf.mxu0
    %v322 = vadd.f32 %v136, %v321
    %v323 = vpop.f32.mrf.mxu0
    %v324 = vpop.f32.mrf.mxu0
    %v325 = vadd.f32 %v136, %v324
    %v326 = vpop.f32.mrf.mxu0
    %327 = vmatprep.mubr.bf16.mxu0 0
    %328 = vmatmul.mubr.bf16.gmra.mxu0 %v161
    %v329 = vpop.f32.mrf.mxu0
    %v330 = vadd.f32 %v136, %v329
    %v331 = vpop.f32.mrf.mxu0
    %v332 = vpop.f32.mrf.mxu0
    %v333 = vadd.f32 %v136, %v332
    %v334 = vpop.f32.mrf.mxu0
    %335 = vmatprep.mubr.bf16.mxu0 0
    %336 = vmatmul.mubr.bf16.gmra.mxu0 %v164
    %v337 = vpop.f32.mrf.mxu0
    %v338 = vadd.f32 %v136, %v337
    %v339 = vpop.f32.mrf.mxu0
    %v340 = vpop.f32.mrf.mxu0
    %v341 = vadd.f32 %v136, %v340
    %v342 = vpop.f32.mrf.mxu0
    %343 = vmatprep.mubr.bf16.mxu0 0
    %344 = vmatmul.mubr.bf16.gmra.mxu0 %v167
    %v345 = vpop.f32.mrf.mxu0
    %v346 = vadd.f32 %v136, %v345
    %v347 = vpop.f32.mrf.mxu0
    %v348 = vpop.f32.mrf.mxu0
    %v349 = vadd.f32 %v136, %v348
    %v350 = vpop.f32.mrf.mxu0
    %351 = vmatprep.mubr.bf16.mxu0 0
    %352 = vmatmul.mubr.bf16.gmra.mxu0 %v170
    %v353 = vpop.f32.mrf.mxu0
    %v354 = vadd.f32 %v136, %v353
    %v355 = vpop.f32.mrf.mxu0
    %v356 = vpop.f32.mrf.mxu0
    %v357 = vadd.f32 %v136, %v356
    %v358 = vpop.f32.mrf.mxu0
    %359 = vmatprep.mubr.bf16.mxu0 0
    %360 = vmatmul.mubr.bf16.gmra.mxu0 %v173
    %v361 = vpop.f32.mrf.mxu0
    %v362 = vadd.f32 %v136, %v361
    %v363 = vpop.f32.mrf.mxu0
    %v364 = vpop.f32.mrf.mxu0
    %v365 = vadd.f32 %v136, %v364
    %v366 = vpop.f32.mrf.mxu0
    %367 = vmatprep.mubr.bf16.mxu0 0
    %368 = vmatmul.mubr.bf16.gmra.mxu0 %v176
    %v369 = vpop.f32.mrf.mxu0
    %v370 = vadd.f32 %v136, %v369
    %v371 = vpop.f32.mrf.mxu0
    %v372 = vpop.f32.mrf.mxu0
    %v373 = vadd.f32 %v136, %v372
    %v374 = vpop.f32.mrf.mxu0
    %375 = vmatprep.mubr.bf16.mxu0 0
    %376 = vmatmul.mubr.bf16.gmra.mxu0 %v179
    %v377 = vpop.f32.mrf.mxu0
    %v378 = vadd.f32 %v136, %v377
    %v379 = vpop.f32.mrf.mxu0
    %v380 = vpop.f32.mrf.mxu0
    %v381 = vadd.f32 %v136, %v380
    %v382 = vpop.f32.mrf.mxu0
    %383 = vmatprep.mubr.bf16.mxu0 0
    %384 = vmatmul.mubr.bf16.gmra.mxu0 %v182
    %v385 = vpop.f32.mrf.mxu0
    %v386 = vadd.f32 %v136, %v385
    %v387 = vpop.f32.mrf.mxu0
    %v388 = vpop.f32.mrf.mxu0
    %v389 = vadd.f32 %v136, %v388
    %v390 = vpop.f32.mrf.mxu0
    %391 = vmatprep.mubr.bf16.mxu0 0
    %392 = vmatmul.mubr.bf16.gmra.mxu0 %v185
    %v393 = vpop.f32.mrf.mxu0
    %v394 = vadd.f32 %v136, %v393
    %v395 = vpop.f32.mrf.mxu0
    %v396 = vpop.f32.mrf.mxu0
    %v397 = vadd.f32 %v136, %v396
    %v398 = vpop.f32.mrf.mxu0
    %399 = vmatprep.mubr.bf16.mxu0 0
    %400 = vmatmul.mubr.bf16.gmra.mxu0 %v188
    %v401 = vpop.f32.mrf.mxu0
    %v402 = vadd.f32 %v136, %v401
    %v403 = vpop.f32.mrf.mxu0
    %v404 = vpop.f32.mrf.mxu0
    %v405 = vadd.f32 %v136, %v404
    %v406 = vpop.f32.mrf.mxu0
    %407 = vmatprep.mubr.bf16.mxu0 0
    %408 = vmatmul.mubr.bf16.gmra.mxu0 %v191
    %v409 = vpop.f32.mrf.mxu0
    %v410 = vadd.f32 %v136, %v409
    %v411 = vpop.f32.mrf.mxu0
    %v412 = vpop.f32.mrf.mxu0
    %v413 = vadd.f32 %v136, %v412
    %v414 = vpop.f32.mrf.mxu0
    %415 = vmatprep.mubr.bf16.mxu0 0
    %416 = vmatmul.mubr.bf16.gmra.mxu0 %v194
    %v417 = vpop.f32.mrf.mxu0
    %v418 = vadd.f32 %v136, %v417
    %v419 = vpop.f32.mrf.mxu0
    %v420 = vpop.f32.mrf.mxu0
    %v421 = vadd.f32 %v136, %v420
    %v422 = vpop.f32.mrf.mxu0
    %423 = vmatprep.mubr.bf16.mxu0 0
    %424 = vmatmul.mubr.bf16.gmra.mxu0 %v197
    %v425 = vpop.f32.mrf.mxu0
    %v426 = vadd.f32 %v136, %v425
    %v427 = vpop.f32.mrf.mxu0
    %v428 = vpop.f32.mrf.mxu0
    %v429 = vadd.f32 %v136, %v428
    %v430 = vpop.f32.mrf.mxu0
    %431 = vmatprep.mubr.bf16.mxu0 0
    %432 = vmatmul.mubr.bf16.gmra.mxu0 %v200
    %v433 = vpop.f32.mrf.mxu0
    %v434 = vadd.f32 %v136, %v433
    %v435 = vpop.f32.mrf.mxu0
    %v436 = vpop.f32.mrf.mxu0
    %v437 = vadd.f32 %v136, %v436
    %v438 = vpop.f32.mrf.mxu0
    %439 = vmatprep.mubr.bf16.mxu0 0
    %440 = vmatmul.mubr.bf16.gmra.mxu0 %v203
    %v441 = vpop.f32.mrf.mxu0
    %v442 = vadd.f32 %v136, %v441
    %v443 = vpop.f32.mrf.mxu0
    %v444 = vpop.f32.mrf.mxu0
    %v445 = vadd.f32 %v136, %v444
    %v446 = vpop.f32.mrf.mxu0
    %447 = vmatprep.mubr.bf16.mxu0 0
    %448 = vmatmul.mubr.bf16.gmra.mxu0 %v206
    %v449 = vpop.f32.mrf.mxu0
    %v450 = vadd.f32 %v136, %v449
    %v451 = vpop.f32.mrf.mxu0
    %v452 = vpop.f32.mrf.mxu0
    %v453 = vadd.f32 %v136, %v452
    %v454 = vpop.f32.mrf.mxu0
    %455 = vmatprep.mubr.bf16.mxu0 0
    %456 = vmatmul.mubr.bf16.gmra.mxu0 %v209
    %v457 = vpop.f32.mrf.mxu0
    %v458 = vadd.f32 %v136, %v457
    %v459 = vpop.f32.mrf.mxu0
    %v460 = vpop.f32.mrf.mxu0
    %v461 = vadd.f32 %v136, %v460
    %v462 = vpop.f32.mrf.mxu0
    %463 = vmatprep.mubr.bf16.mxu0 0
    %464 = vmatmul.mubr.bf16.gmra.mxu0 %v212
    %v465 = vpop.f32.mrf.mxu0
    %v466 = vadd.f32 %v136, %v465
    %v467 = vpop.f32.mrf.mxu0
    %v468 = vpop.f32.mrf.mxu0
    %v469 = vadd.f32 %v136, %v468
    %v470 = vpop.f32.mrf.mxu0
    %471 = vmatprep.mubr.bf16.mxu0 0
    %472 = vmatmul.mubr.bf16.gmra.mxu0 %v215
    %v473 = vpop.f32.mrf.mxu0
    %v474 = vadd.f32 %v136, %v473
    %v475 = vpop.f32.mrf.mxu0
    %v476 = vpop.f32.mrf.mxu0
    %v477 = vadd.f32 %v136, %v476
    %v478 = vpop.f32.mrf.mxu0
    %479 = vmatprep.mubr.bf16.mxu0 0
    %480 = vmatmul.mubr.bf16.gmra.mxu0 %v218
    %v481 = vpop.f32.mrf.mxu0
    %v482 = vadd.f32 %v136, %v481
    %v483 = vpop.f32.mrf.mxu0
    %v484 = vpop.f32.mrf.mxu0
    %v485 = vadd.f32 %v136, %v484
    %v486 = vpop.f32.mrf.mxu0
    %487 = vmatprep.mubr.bf16.mxu0 0
    %488 = vmatmul.mubr.bf16.gmra.mxu0 %v221
    %v489 = vpop.f32.mrf.mxu0
    %v490 = vadd.f32 %v136, %v489
    %v491 = vpop.f32.mrf.mxu0
    %v492 = vpop.f32.mrf.mxu0
    %v493 = vadd.f32 %v136, %v492
    %v494 = vpop.f32.mrf.mxu0
    %495 = vmatprep.mubr.bf16.mxu0 0
    %496 = vmatmul.mubr.bf16.gmra.mxu0 %v224
    %v497 = vpop.f32.mrf.mxu0
    %v498 = vadd.f32 %v136, %v497
    %v499 = vpop.f32.mrf.mxu0
    %v500 = vpop.f32.mrf.mxu0
    %v501 = vadd.f32 %v136, %v500
    %v502 = vpop.f32.mrf.mxu0
    %503 = vmatprep.mubr.bf16.mxu0 0
    %504 = vmatmul.mubr.bf16.gmra.mxu0 %v227
    %v505 = vpop.f32.mrf.mxu0
    %v506 = vadd.f32 %v136, %v505
    %v507 = vpop.f32.mrf.mxu0
    %v508 = vpop.f32.mrf.mxu0
    %v509 = vadd.f32 %v136, %v508
    %v510 = vpop.f32.mrf.mxu0
    %511 = vmatprep.mubr.bf16.mxu0 0
    %512 = vmatmul.mubr.bf16.gmra.mxu0 %v230
    %v513 = vpop.f32.mrf.mxu0
    %v514 = vadd.f32 %v136, %v513
    %v515 = vpop.f32.mrf.mxu0
    %v516 = vpop.f32.mrf.mxu0
    %v517 = vadd.f32 %v136, %v516
    %v518 = vpop.f32.mrf.mxu0
    %519 = vmatprep.mubr.bf16.mxu0 0
    %520 = vmatmul.mubr.bf16.gmra.mxu0 %v233
    %v521 = vpop.f32.mrf.mxu0
    %v522 = vadd.f32 %v136, %v521
    %v523 = vpop.f32.mrf.mxu0
    %v524 = vpop.f32.mrf.mxu0
    %v525 = vadd.f32 %v136, %v524
    %v526 = vpop.f32.mrf.mxu0
    %527 = vdwg.mxu0
    %v528 = vmax.f32 %v274, 0.0
    %v529 = vmax.f32 %v277, 0.0
    %v530 = vmax.f32 %v282, 0.0
    %v531 = vmax.f32 %v285, 0.0
    %v532 = vmax.f32 %v290, 0.0
    %v533 = vmax.f32 %v293, 0.0
    %v534 = vmax.f32 %v298, 0.0
    %v535 = vmax.f32 %v301, 0.0
    %v536 = vmax.f32 %v306, 0.0
    %v537 = vmax.f32 %v309, 0.0
    %v538 = vmax.f32 %v314, 0.0
    %v539 = vmax.f32 %v317, 0.0
    %v540 = vmax.f32 %v322, 0.0
    %v541 = vmax.f32 %v325, 0.0
    %v542 = vmax.f32 %v330, 0.0
    %v543 = vmax.f32 %v333, 0.0
    %v544 = vmax.f32 %v338, 0.0
    %v545 = vmax.f32 %v341, 0.0
    %v546 = vmax.f32 %v346, 0.0
    %v547 = vmax.f32 %v349, 0.0
    %v548 = vmax.f32 %v354, 0.0
    %v549 = vmax.f32 %v357, 0.0
    %v550 = vmax.f32 %v362, 0.0
    %v551 = vmax.f32 %v365, 0.0
    %v552 = vmax.f32 %v370, 0.0
    %v553 = vmax.f32 %v373, 0.0
    %v554 = vmax.f32 %v378, 0.0
    %v555 = vmax.f32 %v381, 0.0
    %v556 = vmax.f32 %v386, 0.0
    %v557 = vmax.f32 %v389, 0.0
    %v558 = vmax.f32 %v394, 0.0
    %v559 = vmax.f32 %v397, 0.0
    %v560 = vmax.f32 %v402, 0.0
    %v561 = vmax.f32 %v405, 0.0
    %v562 = vmax.f32 %v410, 0.0
    %v563 = vmax.f32 %v413, 0.0
    %v564 = vmax.f32 %v418, 0.0
    %v565 = vmax.f32 %v421, 0.0
    %v566 = vmax.f32 %v426, 0.0
    %v567 = vmax.f32 %v429, 0.0
    %v568 = vmax.f32 %v434, 0.0
    %v569 = vmax.f32 %v437, 0.0
    %v570 = vmax.f32 %v442, 0.0
    %v571 = vmax.f32 %v445, 0.0
    %v572 = vmax.f32 %v450, 0.0
    %v573 = vmax.f32 %v453, 0.0
    %v574 = vmax.f32 %v458, 0.0
    %v575 = vmax.f32 %v461, 0.0
    %v576 = vmax.f32 %v466, 0.0
    %v577 = vmax.f32 %v469, 0.0
    %v578 = vmax.f32 %v474, 0.0
    %v579 = vmax.f32 %v477, 0.0
    %v580 = vmax.f32 %v482, 0.0
    %v581 = vmax.f32 %v485, 0.0
    %v582 = vmax.f32 %v490, 0.0
    %v583 = vmax.f32 %v493, 0.0
    %v584 = vmax.f32 %v498, 0.0
    %v585 = vmax.f32 %v501, 0.0
    %v586 = vmax.f32 %v506, 0.0
    %v587 = vmax.f32 %v509, 0.0
    %v588 = vmax.f32 %v514, 0.0
    %v589 = vmax.f32 %v517, 0.0
    %v590 = vmax.f32 %v522, 0.0
    %v591 = vmax.f32 %v525, 0.0
    %v592 = vld [vmem:[%s3] sm:$0xf]
    %v593 = vld [vmem:[%s3 + $0x4] sm:$0xf]
    %v594 = vld [vmem:[%s3 + $0x8] sm:$0xf]
    %v595 = vld [vmem:[%s3 + $0xc] sm:$0xf]
    %v596 = vld [vmem:[%s4] sm:$0x1]
    %v597 = vpack.c.bf16 %v529, %v528
    %v598 = vpack.c.bf16 %v531, %v530
    %v599 = vpack.c.bf16 %v533, %v532
    %v600 = vpack.c.bf16 %v535, %v534
    %v601 = vpack.c.bf16 %v537, %v536
    %v602 = vpack.c.bf16 %v539, %v538
    %v603 = vpack.c.bf16 %v541, %v540
    %v604 = vpack.c.bf16 %v543, %v542
    %v605 = vpack.c.bf16 %v545, %v544
    %v606 = vpack.c.bf16 %v547, %v546
    %v607 = vpack.c.bf16 %v549, %v548
    %v608 = vpack.c.bf16 %v551, %v550
    %v609 = vpack.c.bf16 %v553, %v552
    %v610 = vpack.c.bf16 %v555, %v554
    %v611 = vpack.c.bf16 %v557, %v556
    %v612 = vpack.c.bf16 %v559, %v558
    %v613 = vpack.c.bf16 %v561, %v560
    %v614 = vpack.c.bf16 %v563, %v562
    %v615 = vpack.c.bf16 %v565, %v564
    %v616 = vpack.c.bf16 %v567, %v566
    %v617 = vpack.c.bf16 %v569, %v568
    %v618 = vpack.c.bf16 %v571, %v570
    %v619 = vpack.c.bf16 %v573, %v572
    %v620 = vpack.c.bf16 %v575, %v574
    %v621 = vpack.c.bf16 %v577, %v576
    %v622 = vpack.c.bf16 %v579, %v578
    %v623 = vpack.c.bf16 %v581, %v580
    %v624 = vpack.c.bf16 %v583, %v582
    %v625 = vpack.c.bf16 %v585, %v584
    %v626 = vpack.c.bf16 %v587, %v586
    %v627 = vpack.c.bf16 %v589, %v588
    %v628 = vpack.c.bf16 %v591, %v590
    %v630 = vlaneseq
    %v631 = vshrl.u32 %v630, 7
    %v632 = vsub.s32 0, %v631
    %v633 = vrot.slane %v596, %v632
    %v639 = vunpack.c.l.b16 %v592
    %v640 = vunpack.c.l.b16 %v593
    %v641 = vunpack.c.l.b16 %v594
    %v642 = vunpack.c.l.b16 %v595
    %v643 = vpack.c.b16 %v640, %v639
    %v644 = vpack.c.b16 %v642, %v641
    %vm647 = vcmask 261120
    %v649 = vsel %vm647, %v597, 0
    %v652 = vsel %vm647, %v598, 0
    %v655 = vsel %vm647, %v599, 0
    %v658 = vsel %vm647, %v600, 0
    %v661 = vsel %vm647, %v601, 0
    %v664 = vsel %vm647, %v602, 0
    %v667 = vsel %vm647, %v603, 0
    %v670 = vsel %vm647, %v604, 0
    %v673 = vsel %vm647, %v605, 0
    %v676 = vsel %vm647, %v606, 0
    %v679 = vsel %vm647, %v607, 0
    %v682 = vsel %vm647, %v608, 0
    %v685 = vsel %vm647, %v609, 0
    %v688 = vsel %vm647, %v610, 0
    %v691 = vsel %vm647, %v611, 0
    %v694 = vsel %vm647, %v612, 0
    %v697 = vsel %vm647, %v613, 0
    %v700 = vsel %vm647, %v614, 0
    %v703 = vsel %vm647, %v615, 0
    %v706 = vsel %vm647, %v616, 0
    %v709 = vsel %vm647, %v617, 0
    %v712 = vsel %vm647, %v618, 0
    %v715 = vsel %vm647, %v619, 0
    %v718 = vsel %vm647, %v620, 0
    %v721 = vsel %vm647, %v621, 0
    %v724 = vsel %vm647, %v622, 0
    %v727 = vsel %vm647, %v623, 0
    %v730 = vsel %vm647, %v624, 0
    %v733 = vsel %vm647, %v625, 0
    %v736 = vsel %vm647, %v626, 0
    %v739 = vsel %vm647, %v627, 0
    %v742 = vsel %vm647, %v628, 0
    %744 = vmatprep.subr.bf16.mxu0 0
    %745 = vmatpush1.bf16.msra.mxu0 0
    %746 = vmatprep.subr.bf16.mxu0 0
    %747 = vmatpush1.bf16.msra.mxu0 0
    %748 = vmatprep.subr.bf16.mxu0 0
    %749 = vmatpush1.bf16.msra.mxu0 0
    %750 = vmatprep.subr.bf16.mxu0 0
    %751 = vmatpush1.bf16.msra.mxu0 0
    %752 = vmatprep.subr.bf16.mxu0 0
    %753 = vmatpush1.bf16.msra.mxu0 0
    %754 = vmatprep.subr.bf16.mxu0 0
    %755 = vmatpush1.bf16.msra.mxu0 0
    %756 = vmatprep.subr.bf16.mxu0 0
    %757 = vmatpush1.bf16.msra.mxu0 %v644
    %758 = vmatprep.subr.bf16.mxu0 0
    %759 = vmatpush1.bf16.msra.mxu0 %v643
    %760 = vmatprep.subr.bf16.mxu0 0
    %761 = vmatpush2.bf16.msra.mxu0 0
    %762 = vmatprep.subr.bf16.mxu0 0
    %763 = vmatpush2.bf16.msra.mxu0 0
    %764 = vmatprep.subr.bf16.mxu0 0
    %765 = vmatpush2.bf16.msra.mxu0 0
    %766 = vmatprep.subr.bf16.mxu0 0
    %767 = vmatpush2.bf16.msra.mxu0 0
    %768 = vmatprep.subr.bf16.mxu0 0
    %769 = vmatpush2.bf16.msra.mxu0 0
    %770 = vmatprep.subr.bf16.mxu0 0
    %771 = vmatpush2.bf16.msra.mxu0 0
    %772 = vmatprep.subr.bf16.mxu0 0
    %773 = vmatpush2.bf16.msra.mxu0 0
    %774 = vmatprep.subr.bf16.mxu0 0
    %775 = vmatpush2.bf16.msra.mxu0 0
    %776 = vmatprep.mubr.bf16.mxu0 0
    %777 = vmatmul.mubr.bf16.gmra.mxu0 %v649
    %v778 = vpop.f32.mrf.mxu0
    %v779 = vadd.f32 %v633, %v778
    %v780 = vpop.f32.mrf.mxu0
    %v781 = vpop.f32.mrf.mxu0
    %v782 = vadd.f32 %v633, %v781
    %v783 = vpop.f32.mrf.mxu0
    %784 = vmatprep.mubr.bf16.mxu0 0
    %785 = vmatmul.mubr.bf16.gmra.mxu0 %v652
    %v786 = vpop.f32.mrf.mxu0
    %v787 = vadd.f32 %v633, %v786
    %v788 = vpop.f32.mrf.mxu0
    %v789 = vpop.f32.mrf.mxu0
    %v790 = vadd.f32 %v633, %v789
    %v791 = vpop.f32.mrf.mxu0
    %792 = vmatprep.mubr.bf16.mxu0 0
    %793 = vmatmul.mubr.bf16.gmra.mxu0 %v655
    %v794 = vpop.f32.mrf.mxu0
    %v795 = vadd.f32 %v633, %v794
    %v796 = vpop.f32.mrf.mxu0
    %v797 = vpop.f32.mrf.mxu0
    %v798 = vadd.f32 %v633, %v797
    %v799 = vpop.f32.mrf.mxu0
    %800 = vmatprep.mubr.bf16.mxu0 0
    %801 = vmatmul.mubr.bf16.gmra.mxu0 %v658
    %v802 = vpop.f32.mrf.mxu0
    %v803 = vadd.f32 %v633, %v802
    %v804 = vpop.f32.mrf.mxu0
    %v805 = vpop.f32.mrf.mxu0
    %v806 = vadd.f32 %v633, %v805
    %v807 = vpop.f32.mrf.mxu0
    %808 = vmatprep.mubr.bf16.mxu0 0
    %809 = vmatmul.mubr.bf16.gmra.mxu0 %v661
    %v810 = vpop.f32.mrf.mxu0
    %v811 = vadd.f32 %v633, %v810
    %v812 = vpop.f32.mrf.mxu0
    %v813 = vpop.f32.mrf.mxu0
    %v814 = vadd.f32 %v633, %v813
    %v815 = vpop.f32.mrf.mxu0
    %816 = vmatprep.mubr.bf16.mxu0 0
    %817 = vmatmul.mubr.bf16.gmra.mxu0 %v664
    %v818 = vpop.f32.mrf.mxu0
    %v819 = vadd.f32 %v633, %v818
    %v820 = vpop.f32.mrf.mxu0
    %v821 = vpop.f32.mrf.mxu0
    %v822 = vadd.f32 %v633, %v821
    %v823 = vpop.f32.mrf.mxu0
    %824 = vmatprep.mubr.bf16.mxu0 0
    %825 = vmatmul.mubr.bf16.gmra.mxu0 %v667
    %v826 = vpop.f32.mrf.mxu0
    %v827 = vadd.f32 %v633, %v826
    %v828 = vpop.f32.mrf.mxu0
    %v829 = vpop.f32.mrf.mxu0
    %v830 = vadd.f32 %v633, %v829
    %v831 = vpop.f32.mrf.mxu0
    %832 = vmatprep.mubr.bf16.mxu0 0
    %833 = vmatmul.mubr.bf16.gmra.mxu0 %v670
    %v834 = vpop.f32.mrf.mxu0
    %v835 = vadd.f32 %v633, %v834
    %v836 = vpop.f32.mrf.mxu0
    %v837 = vpop.f32.mrf.mxu0
    %v838 = vadd.f32 %v633, %v837
    %v839 = vpop.f32.mrf.mxu0
    %840 = vmatprep.mubr.bf16.mxu0 0
    %841 = vmatmul.mubr.bf16.gmra.mxu0 %v673
    %v842 = vpop.f32.mrf.mxu0
    %v843 = vadd.f32 %v633, %v842
    %v844 = vpop.f32.mrf.mxu0
    %v845 = vpop.f32.mrf.mxu0
    %v846 = vadd.f32 %v633, %v845
    %v847 = vpop.f32.mrf.mxu0
    %848 = vmatprep.mubr.bf16.mxu0 0
    %849 = vmatmul.mubr.bf16.gmra.mxu0 %v676
    %v850 = vpop.f32.mrf.mxu0
    %v851 = vadd.f32 %v633, %v850
    %v852 = vpop.f32.mrf.mxu0
    %v853 = vpop.f32.mrf.mxu0
    %v854 = vadd.f32 %v633, %v853
    %v855 = vpop.f32.mrf.mxu0
    %856 = vmatprep.mubr.bf16.mxu0 0
    %857 = vmatmul.mubr.bf16.gmra.mxu0 %v679
    %v858 = vpop.f32.mrf.mxu0
    %v859 = vadd.f32 %v633, %v858
    %v860 = vpop.f32.mrf.mxu0
    %v861 = vpop.f32.mrf.mxu0
    %v862 = vadd.f32 %v633, %v861
    %v863 = vpop.f32.mrf.mxu0
    %864 = vmatprep.mubr.bf16.mxu0 0
    %865 = vmatmul.mubr.bf16.gmra.mxu0 %v682
    %v866 = vpop.f32.mrf.mxu0
    %v867 = vadd.f32 %v633, %v866
    %v868 = vpop.f32.mrf.mxu0
    %v869 = vpop.f32.mrf.mxu0
    %v870 = vadd.f32 %v633, %v869
    %v871 = vpop.f32.mrf.mxu0
    %872 = vmatprep.mubr.bf16.mxu0 0
    %873 = vmatmul.mubr.bf16.gmra.mxu0 %v685
    %v874 = vpop.f32.mrf.mxu0
    %v875 = vadd.f32 %v633, %v874
    %v876 = vpop.f32.mrf.mxu0
    %v877 = vpop.f32.mrf.mxu0
    %v878 = vadd.f32 %v633, %v877
    %v879 = vpop.f32.mrf.mxu0
    %880 = vmatprep.mubr.bf16.mxu0 0
    %881 = vmatmul.mubr.bf16.gmra.mxu0 %v688
    %v882 = vpop.f32.mrf.mxu0
    %v883 = vadd.f32 %v633, %v882
    %v884 = vpop.f32.mrf.mxu0
    %v885 = vpop.f32.mrf.mxu0
    %v886 = vadd.f32 %v633, %v885
    %v887 = vpop.f32.mrf.mxu0
    %888 = vmatprep.mubr.bf16.mxu0 0
    %889 = vmatmul.mubr.bf16.gmra.mxu0 %v691
    %v890 = vpop.f32.mrf.mxu0
    %v891 = vadd.f32 %v633, %v890
    %v892 = vpop.f32.mrf.mxu0
    %v893 = vpop.f32.mrf.mxu0
    %v894 = vadd.f32 %v633, %v893
    %v895 = vpop.f32.mrf.mxu0
    %896 = vmatprep.mubr.bf16.mxu0 0
    %897 = vmatmul.mubr.bf16.gmra.mxu0 %v694
    %v898 = vpop.f32.mrf.mxu0
    %v899 = vadd.f32 %v633, %v898
    %v900 = vpop.f32.mrf.mxu0
    %v901 = vpop.f32.mrf.mxu0
    %v902 = vadd.f32 %v633, %v901
    %v903 = vpop.f32.mrf.mxu0
    %904 = vmatprep.mubr.bf16.mxu0 0
    %905 = vmatmul.mubr.bf16.gmra.mxu0 %v697
    %v906 = vpop.f32.mrf.mxu0
    %v907 = vadd.f32 %v633, %v906
    %v908 = vpop.f32.mrf.mxu0
    %v909 = vpop.f32.mrf.mxu0
    %v910 = vadd.f32 %v633, %v909
    %v911 = vpop.f32.mrf.mxu0
    %912 = vmatprep.mubr.bf16.mxu0 0
    %913 = vmatmul.mubr.bf16.gmra.mxu0 %v700
    %v914 = vpop.f32.mrf.mxu0
    %v915 = vadd.f32 %v633, %v914
    %v916 = vpop.f32.mrf.mxu0
    %v917 = vpop.f32.mrf.mxu0
    %v918 = vadd.f32 %v633, %v917
    %v919 = vpop.f32.mrf.mxu0
    %920 = vmatprep.mubr.bf16.mxu0 0
    %921 = vmatmul.mubr.bf16.gmra.mxu0 %v703
    %v922 = vpop.f32.mrf.mxu0
    %v923 = vadd.f32 %v633, %v922
    %v924 = vpop.f32.mrf.mxu0
    %v925 = vpop.f32.mrf.mxu0
    %v926 = vadd.f32 %v633, %v925
    %v927 = vpop.f32.mrf.mxu0
    %928 = vmatprep.mubr.bf16.mxu0 0
    %929 = vmatmul.mubr.bf16.gmra.mxu0 %v706
    %v930 = vpop.f32.mrf.mxu0
    %v931 = vadd.f32 %v633, %v930
    %v932 = vpop.f32.mrf.mxu0
    %v933 = vpop.f32.mrf.mxu0
    %v934 = vadd.f32 %v633, %v933
    %v935 = vpop.f32.mrf.mxu0
    %936 = vmatprep.mubr.bf16.mxu0 0
    %937 = vmatmul.mubr.bf16.gmra.mxu0 %v709
    %v938 = vpop.f32.mrf.mxu0
    %v939 = vadd.f32 %v633, %v938
    %v940 = vpop.f32.mrf.mxu0
    %v941 = vpop.f32.mrf.mxu0
    %v942 = vadd.f32 %v633, %v941
    %v943 = vpop.f32.mrf.mxu0
    %944 = vmatprep.mubr.bf16.mxu0 0
    %945 = vmatmul.mubr.bf16.gmra.mxu0 %v712
    %v946 = vpop.f32.mrf.mxu0
    %v947 = vadd.f32 %v633, %v946
    %v948 = vpop.f32.mrf.mxu0
    %v949 = vpop.f32.mrf.mxu0
    %v950 = vadd.f32 %v633, %v949
    %v951 = vpop.f32.mrf.mxu0
    %952 = vmatprep.mubr.bf16.mxu0 0
    %953 = vmatmul.mubr.bf16.gmra.mxu0 %v715
    %v954 = vpop.f32.mrf.mxu0
    %v955 = vadd.f32 %v633, %v954
    %v956 = vpop.f32.mrf.mxu0
    %v957 = vpop.f32.mrf.mxu0
    %v958 = vadd.f32 %v633, %v957
    %v959 = vpop.f32.mrf.mxu0
    %960 = vmatprep.mubr.bf16.mxu0 0
    %961 = vmatmul.mubr.bf16.gmra.mxu0 %v718
    %v962 = vpop.f32.mrf.mxu0
    %v963 = vadd.f32 %v633, %v962
    %v964 = vpop.f32.mrf.mxu0
    %v965 = vpop.f32.mrf.mxu0
    %v966 = vadd.f32 %v633, %v965
    %v967 = vpop.f32.mrf.mxu0
    %968 = vmatprep.mubr.bf16.mxu0 0
    %969 = vmatmul.mubr.bf16.gmra.mxu0 %v721
    %v970 = vpop.f32.mrf.mxu0
    %v971 = vadd.f32 %v633, %v970
    %v972 = vpop.f32.mrf.mxu0
    %v973 = vpop.f32.mrf.mxu0
    %v974 = vadd.f32 %v633, %v973
    %v975 = vpop.f32.mrf.mxu0
    %976 = vmatprep.mubr.bf16.mxu0 0
    %977 = vmatmul.mubr.bf16.gmra.mxu0 %v724
    %v978 = vpop.f32.mrf.mxu0
    %v979 = vadd.f32 %v633, %v978
    %v980 = vpop.f32.mrf.mxu0
    %v981 = vpop.f32.mrf.mxu0
    %v982 = vadd.f32 %v633, %v981
    %v983 = vpop.f32.mrf.mxu0
    %984 = vmatprep.mubr.bf16.mxu0 0
    %985 = vmatmul.mubr.bf16.gmra.mxu0 %v727
    %v986 = vpop.f32.mrf.mxu0
    %v987 = vadd.f32 %v633, %v986
    %v988 = vpop.f32.mrf.mxu0
    %v989 = vpop.f32.mrf.mxu0
    %v990 = vadd.f32 %v633, %v989
    %v991 = vpop.f32.mrf.mxu0
    %992 = vmatprep.mubr.bf16.mxu0 0
    %993 = vmatmul.mubr.bf16.gmra.mxu0 %v730
    %v994 = vpop.f32.mrf.mxu0
    %v995 = vadd.f32 %v633, %v994
    %v996 = vpop.f32.mrf.mxu0
    %v997 = vpop.f32.mrf.mxu0
    %v998 = vadd.f32 %v633, %v997
    %v999 = vpop.f32.mrf.mxu0
    %1000 = vmatprep.mubr.bf16.mxu0 0
    %1001 = vmatmul.mubr.bf16.gmra.mxu0 %v733
    %v1002 = vpop.f32.mrf.mxu0
    %v1003 = vadd.f32 %v633, %v1002
    %v1004 = vpop.f32.mrf.mxu0
    %v1005 = vpop.f32.mrf.mxu0
    %v1006 = vadd.f32 %v633, %v1005
    %v1007 = vpop.f32.mrf.mxu0
    %1008 = vmatprep.mubr.bf16.mxu0 0
    %1009 = vmatmul.mubr.bf16.gmra.mxu0 %v736
    %v1010 = vpop.f32.mrf.mxu0
    %v1011 = vadd.f32 %v633, %v1010
    %v1012 = vpop.f32.mrf.mxu0
    %v1013 = vpop.f32.mrf.mxu0
    %v1014 = vadd.f32 %v633, %v1013
    %v1015 = vpop.f32.mrf.mxu0
    %1016 = vmatprep.mubr.bf16.mxu0 0
    %1017 = vmatmul.mubr.bf16.gmra.mxu0 %v739
    %v1018 = vpop.f32.mrf.mxu0
    %v1019 = vadd.f32 %v633, %v1018
    %v1020 = vpop.f32.mrf.mxu0
    %v1021 = vpop.f32.mrf.mxu0
    %v1022 = vadd.f32 %v633, %v1021
    %v1023 = vpop.f32.mrf.mxu0
    %1024 = vmatprep.mubr.bf16.mxu0 0
    %1025 = vmatmul.mubr.bf16.gmra.mxu0 %v742
    %v1026 = vpop.f32.mrf.mxu0
    %v1027 = vadd.f32 %v633, %v1026
    %v1028 = vpop.f32.mrf.mxu0
    %v1029 = vpop.f32.mrf.mxu0
    %v1030 = vadd.f32 %v633, %v1029
    %v1031 = vpop.f32.mrf.mxu0
    %1032 = vdwg.mxu0
    %v1033 = vmax.f32 %v779, 0.0
    %v1034 = vmax.f32 %v782, 0.0
    %v1035 = vmax.f32 %v787, 0.0
    %v1036 = vmax.f32 %v790, 0.0
    %v1037 = vmax.f32 %v795, 0.0
    %v1038 = vmax.f32 %v798, 0.0
    %v1039 = vmax.f32 %v803, 0.0
    %v1040 = vmax.f32 %v806, 0.0
    %v1041 = vmax.f32 %v811, 0.0
    %v1042 = vmax.f32 %v814, 0.0
    %v1043 = vmax.f32 %v819, 0.0
    %v1044 = vmax.f32 %v822, 0.0
    %v1045 = vmax.f32 %v827, 0.0
    %v1046 = vmax.f32 %v830, 0.0
    %v1047 = vmax.f32 %v835, 0.0
    %v1048 = vmax.f32 %v838, 0.0
    %v1049 = vmax.f32 %v843, 0.0
    %v1050 = vmax.f32 %v846, 0.0
    %v1051 = vmax.f32 %v851, 0.0
    %v1052 = vmax.f32 %v854, 0.0
    %v1053 = vmax.f32 %v859, 0.0
    %v1054 = vmax.f32 %v862, 0.0
    %v1055 = vmax.f32 %v867, 0.0
    %v1056 = vmax.f32 %v870, 0.0
    %v1057 = vmax.f32 %v875, 0.0
    %v1058 = vmax.f32 %v878, 0.0
    %v1059 = vmax.f32 %v883, 0.0
    %v1060 = vmax.f32 %v886, 0.0
    %v1061 = vmax.f32 %v891, 0.0
    %v1062 = vmax.f32 %v894, 0.0
    %v1063 = vmax.f32 %v899, 0.0
    %v1064 = vmax.f32 %v902, 0.0
    %v1065 = vmax.f32 %v907, 0.0
    %v1066 = vmax.f32 %v910, 0.0
    %v1067 = vmax.f32 %v915, 0.0
    %v1068 = vmax.f32 %v918, 0.0
    %v1069 = vmax.f32 %v923, 0.0
    %v1070 = vmax.f32 %v926, 0.0
    %v1071 = vmax.f32 %v931, 0.0
    %v1072 = vmax.f32 %v934, 0.0
    %v1073 = vmax.f32 %v939, 0.0
    %v1074 = vmax.f32 %v942, 0.0
    %v1075 = vmax.f32 %v947, 0.0
    %v1076 = vmax.f32 %v950, 0.0
    %v1077 = vmax.f32 %v955, 0.0
    %v1078 = vmax.f32 %v958, 0.0
    %v1079 = vmax.f32 %v963, 0.0
    %v1080 = vmax.f32 %v966, 0.0
    %v1081 = vmax.f32 %v971, 0.0
    %v1082 = vmax.f32 %v974, 0.0
    %v1083 = vmax.f32 %v979, 0.0
    %v1084 = vmax.f32 %v982, 0.0
    %v1085 = vmax.f32 %v987, 0.0
    %v1086 = vmax.f32 %v990, 0.0
    %v1087 = vmax.f32 %v995, 0.0
    %v1088 = vmax.f32 %v998, 0.0
    %v1089 = vmax.f32 %v1003, 0.0
    %v1090 = vmax.f32 %v1006, 0.0
    %v1091 = vmax.f32 %v1011, 0.0
    %v1092 = vmax.f32 %v1014, 0.0
    %v1093 = vmax.f32 %v1019, 0.0
    %v1094 = vmax.f32 %v1022, 0.0
    %v1095 = vmax.f32 %v1027, 0.0
    %v1096 = vmax.f32 %v1030, 0.0
    %v1097 = vld [vmem:[%s5] sm:$0xf]
    %v1098 = vld [vmem:[%s5 + $0x4] sm:$0xf]
    %v1099 = vld [vmem:[%s5 + $0x8] sm:$0xf]
    %v1100 = vld [vmem:[%s5 + $0xc] sm:$0xf]
    %v1101 = vld [vmem:[%s6] sm:$0x1]
    %v1102 = vpack.c.bf16 %v1034, %v1033
    %v1103 = vpack.c.bf16 %v1036, %v1035
    %v1104 = vpack.c.bf16 %v1038, %v1037
    %v1105 = vpack.c.bf16 %v1040, %v1039
    %v1106 = vpack.c.bf16 %v1042, %v1041
    %v1107 = vpack.c.bf16 %v1044, %v1043
    %v1108 = vpack.c.bf16 %v1046, %v1045
    %v1109 = vpack.c.bf16 %v1048, %v1047
    %v1110 = vpack.c.bf16 %v1050, %v1049
    %v1111 = vpack.c.bf16 %v1052, %v1051
    %v1112 = vpack.c.bf16 %v1054, %v1053
    %v1113 = vpack.c.bf16 %v1056, %v1055
    %v1114 = vpack.c.bf16 %v1058, %v1057
    %v1115 = vpack.c.bf16 %v1060, %v1059
    %v1116 = vpack.c.bf16 %v1062, %v1061
    %v1117 = vpack.c.bf16 %v1064, %v1063
    %v1118 = vpack.c.bf16 %v1066, %v1065
    %v1119 = vpack.c.bf16 %v1068, %v1067
    %v1120 = vpack.c.bf16 %v1070, %v1069
    %v1121 = vpack.c.bf16 %v1072, %v1071
    %v1122 = vpack.c.bf16 %v1074, %v1073
    %v1123 = vpack.c.bf16 %v1076, %v1075
    %v1124 = vpack.c.bf16 %v1078, %v1077
    %v1125 = vpack.c.bf16 %v1080, %v1079
    %v1126 = vpack.c.bf16 %v1082, %v1081
    %v1127 = vpack.c.bf16 %v1084, %v1083
    %v1128 = vpack.c.bf16 %v1086, %v1085
    %v1129 = vpack.c.bf16 %v1088, %v1087
    %v1130 = vpack.c.bf16 %v1090, %v1089
    %v1131 = vpack.c.bf16 %v1092, %v1091
    %v1132 = vpack.c.bf16 %v1094, %v1093
    %v1133 = vpack.c.bf16 %v1096, %v1095
    %v1135 = vlaneseq
    %v1136 = vshrl.u32 %v1135, 7
    %v1137 = vsub.s32 0, %v1136
    %v1138 = vrot.slane %v1101, %v1137
    %v1144 = vunpack.c.l.b16 %v1097
    %v1145 = vunpack.c.l.b16 %v1098
    %v1146 = vunpack.c.l.b16 %v1099
    %v1147 = vunpack.c.l.b16 %v1100
    %v1148 = vpack.c.b16 %v1145, %v1144
    %v1149 = vpack.c.b16 %v1147, %v1146
    %v1153 = vsel %vm647, %v1102, 0
    %v1156 = vsel %vm647, %v1103, 0
    %v1159 = vsel %vm647, %v1104, 0
    %v1162 = vsel %vm647, %v1105, 0
    %v1165 = vsel %vm647, %v1106, 0
    %v1168 = vsel %vm647, %v1107, 0
    %v1171 = vsel %vm647, %v1108, 0
    %v1174 = vsel %vm647, %v1109, 0
    %v1177 = vsel %vm647, %v1110, 0
    %v1180 = vsel %vm647, %v1111, 0
    %v1183 = vsel %vm647, %v1112, 0
    %v1186 = vsel %vm647, %v1113, 0
    %v1189 = vsel %vm647, %v1114, 0
    %v1192 = vsel %vm647, %v1115, 0
    %v1195 = vsel %vm647, %v1116, 0
    %v1198 = vsel %vm647, %v1117, 0
    %v1201 = vsel %vm647, %v1118, 0
    %v1204 = vsel %vm647, %v1119, 0
    %v1207 = vsel %vm647, %v1120, 0
    %v1210 = vsel %vm647, %v1121, 0
    %v1213 = vsel %vm647, %v1122, 0
    %v1216 = vsel %vm647, %v1123, 0
    %v1219 = vsel %vm647, %v1124, 0
    %v1222 = vsel %vm647, %v1125, 0
    %v1225 = vsel %vm647, %v1126, 0
    %v1228 = vsel %vm647, %v1127, 0
    %v1231 = vsel %vm647, %v1128, 0
    %v1234 = vsel %vm647, %v1129, 0
    %v1237 = vsel %vm647, %v1130, 0
    %v1240 = vsel %vm647, %v1131, 0
    %v1243 = vsel %vm647, %v1132, 0
    %v1246 = vsel %vm647, %v1133, 0
    %1248 = vmatprep.subr.bf16.mxu0 0
    %1249 = vmatpush1.bf16.msra.mxu0 0
    %1250 = vmatprep.subr.bf16.mxu0 0
    %1251 = vmatpush1.bf16.msra.mxu0 0
    %1252 = vmatprep.subr.bf16.mxu0 0
    %1253 = vmatpush1.bf16.msra.mxu0 0
    %1254 = vmatprep.subr.bf16.mxu0 0
    %1255 = vmatpush1.bf16.msra.mxu0 0
    %1256 = vmatprep.subr.bf16.mxu0 0
    %1257 = vmatpush1.bf16.msra.mxu0 0
    %1258 = vmatprep.subr.bf16.mxu0 0
    %1259 = vmatpush1.bf16.msra.mxu0 0
    %1260 = vmatprep.subr.bf16.mxu0 0
    %1261 = vmatpush1.bf16.msra.mxu0 %v1149
    %1262 = vmatprep.subr.bf16.mxu0 0
    %1263 = vmatpush1.bf16.msra.mxu0 %v1148
    %1264 = vmatprep.subr.bf16.mxu0 0
    %1265 = vmatpush2.bf16.msra.mxu0 0
    %1266 = vmatprep.subr.bf16.mxu0 0
    %1267 = vmatpush2.bf16.msra.mxu0 0
    %1268 = vmatprep.subr.bf16.mxu0 0
    %1269 = vmatpush2.bf16.msra.mxu0 0
    %1270 = vmatprep.subr.bf16.mxu0 0
    %1271 = vmatpush2.bf16.msra.mxu0 0
    %1272 = vmatprep.subr.bf16.mxu0 0
    %1273 = vmatpush2.bf16.msra.mxu0 0
    %1274 = vmatprep.subr.bf16.mxu0 0
    %1275 = vmatpush2.bf16.msra.mxu0 0
    %1276 = vmatprep.subr.bf16.mxu0 0
    %1277 = vmatpush2.bf16.msra.mxu0 0
    %1278 = vmatprep.subr.bf16.mxu0 0
    %1279 = vmatpush2.bf16.msra.mxu0 0
    %1280 = vmatprep.mubr.bf16.mxu0 0
    %1281 = vmatmul.mubr.bf16.gmra.mxu0 %v1153
    %v1282 = vpop.f32.mrf.mxu0
    %v1283 = vadd.f32 %v1138, %v1282
    %v1284 = vpop.f32.mrf.mxu0
    %v1285 = vpop.f32.mrf.mxu0
    %v1286 = vadd.f32 %v1138, %v1285
    %v1287 = vpop.f32.mrf.mxu0
    %1288 = vmatprep.mubr.bf16.mxu0 0
    %1289 = vmatmul.mubr.bf16.gmra.mxu0 %v1156
    %v1290 = vpop.f32.mrf.mxu0
    %v1291 = vadd.f32 %v1138, %v1290
    %v1292 = vpop.f32.mrf.mxu0
    %v1293 = vpop.f32.mrf.mxu0
    %v1294 = vadd.f32 %v1138, %v1293
    %v1295 = vpop.f32.mrf.mxu0
    %1296 = vmatprep.mubr.bf16.mxu0 0
    %1297 = vmatmul.mubr.bf16.gmra.mxu0 %v1159
    %v1298 = vpop.f32.mrf.mxu0
    %v1299 = vadd.f32 %v1138, %v1298
    %v1300 = vpop.f32.mrf.mxu0
    %v1301 = vpop.f32.mrf.mxu0
    %v1302 = vadd.f32 %v1138, %v1301
    %v1303 = vpop.f32.mrf.mxu0
    %1304 = vmatprep.mubr.bf16.mxu0 0
    %1305 = vmatmul.mubr.bf16.gmra.mxu0 %v1162
    %v1306 = vpop.f32.mrf.mxu0
    %v1307 = vadd.f32 %v1138, %v1306
    %v1308 = vpop.f32.mrf.mxu0
    %v1309 = vpop.f32.mrf.mxu0
    %v1310 = vadd.f32 %v1138, %v1309
    %v1311 = vpop.f32.mrf.mxu0
    %1312 = vmatprep.mubr.bf16.mxu0 0
    %1313 = vmatmul.mubr.bf16.gmra.mxu0 %v1165
    %v1314 = vpop.f32.mrf.mxu0
    %v1315 = vadd.f32 %v1138, %v1314
    %v1316 = vpop.f32.mrf.mxu0
    %v1317 = vpop.f32.mrf.mxu0
    %v1318 = vadd.f32 %v1138, %v1317
    %v1319 = vpop.f32.mrf.mxu0
    %1320 = vmatprep.mubr.bf16.mxu0 0
    %1321 = vmatmul.mubr.bf16.gmra.mxu0 %v1168
    %v1322 = vpop.f32.mrf.mxu0
    %v1323 = vadd.f32 %v1138, %v1322
    %v1324 = vpop.f32.mrf.mxu0
    %v1325 = vpop.f32.mrf.mxu0
    %v1326 = vadd.f32 %v1138, %v1325
    %v1327 = vpop.f32.mrf.mxu0
    %1328 = vmatprep.mubr.bf16.mxu0 0
    %1329 = vmatmul.mubr.bf16.gmra.mxu0 %v1171
    %v1330 = vpop.f32.mrf.mxu0
    %v1331 = vadd.f32 %v1138, %v1330
    %v1332 = vpop.f32.mrf.mxu0
    %v1333 = vpop.f32.mrf.mxu0
    %v1334 = vadd.f32 %v1138, %v1333
    %v1335 = vpop.f32.mrf.mxu0
    %1336 = vmatprep.mubr.bf16.mxu0 0
    %1337 = vmatmul.mubr.bf16.gmra.mxu0 %v1174
    %v1338 = vpop.f32.mrf.mxu0
    %v1339 = vadd.f32 %v1138, %v1338
    %v1340 = vpop.f32.mrf.mxu0
    %v1341 = vpop.f32.mrf.mxu0
    %v1342 = vadd.f32 %v1138, %v1341
    %v1343 = vpop.f32.mrf.mxu0
    %1344 = vmatprep.mubr.bf16.mxu0 0
    %1345 = vmatmul.mubr.bf16.gmra.mxu0 %v1177
    %v1346 = vpop.f32.mrf.mxu0
    %v1347 = vadd.f32 %v1138, %v1346
    %v1348 = vpop.f32.mrf.mxu0
    %v1349 = vpop.f32.mrf.mxu0
    %v1350 = vadd.f32 %v1138, %v1349
    %v1351 = vpop.f32.mrf.mxu0
    %1352 = vmatprep.mubr.bf16.mxu0 0
    %1353 = vmatmul.mubr.bf16.gmra.mxu0 %v1180
    %v1354 = vpop.f32.mrf.mxu0
    %v1355 = vadd.f32 %v1138, %v1354
    %v1356 = vpop.f32.mrf.mxu0
    %v1357 = vpop.f32.mrf.mxu0
    %v1358 = vadd.f32 %v1138, %v1357
    %v1359 = vpop.f32.mrf.mxu0
    %1360 = vmatprep.mubr.bf16.mxu0 0
    %1361 = vmatmul.mubr.bf16.gmra.mxu0 %v1183
    %v1362 = vpop.f32.mrf.mxu0
    %v1363 = vadd.f32 %v1138, %v1362
    %v1364 = vpop.f32.mrf.mxu0
    %v1365 = vpop.f32.mrf.mxu0
    %v1366 = vadd.f32 %v1138, %v1365
    %v1367 = vpop.f32.mrf.mxu0
    %1368 = vmatprep.mubr.bf16.mxu0 0
    %1369 = vmatmul.mubr.bf16.gmra.mxu0 %v1186
    %v1370 = vpop.f32.mrf.mxu0
    %v1371 = vadd.f32 %v1138, %v1370
    %v1372 = vpop.f32.mrf.mxu0
    %v1373 = vpop.f32.mrf.mxu0
    %v1374 = vadd.f32 %v1138, %v1373
    %v1375 = vpop.f32.mrf.mxu0
    %1376 = vmatprep.mubr.bf16.mxu0 0
    %1377 = vmatmul.mubr.bf16.gmra.mxu0 %v1189
    %v1378 = vpop.f32.mrf.mxu0
    %v1379 = vadd.f32 %v1138, %v1378
    %v1380 = vpop.f32.mrf.mxu0
    %v1381 = vpop.f32.mrf.mxu0
    %v1382 = vadd.f32 %v1138, %v1381
    %v1383 = vpop.f32.mrf.mxu0
    %1384 = vmatprep.mubr.bf16.mxu0 0
    %1385 = vmatmul.mubr.bf16.gmra.mxu0 %v1192
    %v1386 = vpop.f32.mrf.mxu0
    %v1387 = vadd.f32 %v1138, %v1386
    %v1388 = vpop.f32.mrf.mxu0
    %v1389 = vpop.f32.mrf.mxu0
    %v1390 = vadd.f32 %v1138, %v1389
    %v1391 = vpop.f32.mrf.mxu0
    %1392 = vmatprep.mubr.bf16.mxu0 0
    %1393 = vmatmul.mubr.bf16.gmra.mxu0 %v1195
    %v1394 = vpop.f32.mrf.mxu0
    %v1395 = vadd.f32 %v1138, %v1394
    %v1396 = vpop.f32.mrf.mxu0
    %v1397 = vpop.f32.mrf.mxu0
    %v1398 = vadd.f32 %v1138, %v1397
    %v1399 = vpop.f32.mrf.mxu0
    %1400 = vmatprep.mubr.bf16.mxu0 0
    %1401 = vmatmul.mubr.bf16.gmra.mxu0 %v1198
    %v1402 = vpop.f32.mrf.mxu0
    %v1403 = vadd.f32 %v1138, %v1402
    %v1404 = vpop.f32.mrf.mxu0
    %v1405 = vpop.f32.mrf.mxu0
    %v1406 = vadd.f32 %v1138, %v1405
    %v1407 = vpop.f32.mrf.mxu0
    %1408 = vmatprep.mubr.bf16.mxu0 0
    %1409 = vmatmul.mubr.bf16.gmra.mxu0 %v1201
    %v1410 = vpop.f32.mrf.mxu0
    %v1411 = vadd.f32 %v1138, %v1410
    %v1412 = vpop.f32.mrf.mxu0
    %v1413 = vpop.f32.mrf.mxu0
    %v1414 = vadd.f32 %v1138, %v1413
    %v1415 = vpop.f32.mrf.mxu0
    %1416 = vmatprep.mubr.bf16.mxu0 0
    %1417 = vmatmul.mubr.bf16.gmra.mxu0 %v1204
    %v1418 = vpop.f32.mrf.mxu0
    %v1419 = vadd.f32 %v1138, %v1418
    %v1420 = vpop.f32.mrf.mxu0
    %v1421 = vpop.f32.mrf.mxu0
    %v1422 = vadd.f32 %v1138, %v1421
    %v1423 = vpop.f32.mrf.mxu0
    %1424 = vmatprep.mubr.bf16.mxu0 0
    %1425 = vmatmul.mubr.bf16.gmra.mxu0 %v1207
    %v1426 = vpop.f32.mrf.mxu0
    %v1427 = vadd.f32 %v1138, %v1426
    %v1428 = vpop.f32.mrf.mxu0
    %v1429 = vpop.f32.mrf.mxu0
    %v1430 = vadd.f32 %v1138, %v1429
    %v1431 = vpop.f32.mrf.mxu0
    %1432 = vmatprep.mubr.bf16.mxu0 0
    %1433 = vmatmul.mubr.bf16.gmra.mxu0 %v1210
    %v1434 = vpop.f32.mrf.mxu0
    %v1435 = vadd.f32 %v1138, %v1434
    %v1436 = vpop.f32.mrf.mxu0
    %v1437 = vpop.f32.mrf.mxu0
    %v1438 = vadd.f32 %v1138, %v1437
    %v1439 = vpop.f32.mrf.mxu0
    %1440 = vmatprep.mubr.bf16.mxu0 0
    %1441 = vmatmul.mubr.bf16.gmra.mxu0 %v1213
    %v1442 = vpop.f32.mrf.mxu0
    %v1443 = vadd.f32 %v1138, %v1442
    %v1444 = vpop.f32.mrf.mxu0
    %v1445 = vpop.f32.mrf.mxu0
    %v1446 = vadd.f32 %v1138, %v1445
    %v1447 = vpop.f32.mrf.mxu0
    %1448 = vmatprep.mubr.bf16.mxu0 0
    %1449 = vmatmul.mubr.bf16.gmra.mxu0 %v1216
    %v1450 = vpop.f32.mrf.mxu0
    %v1451 = vadd.f32 %v1138, %v1450
    %v1452 = vpop.f32.mrf.mxu0
    %v1453 = vpop.f32.mrf.mxu0
    %v1454 = vadd.f32 %v1138, %v1453
    %v1455 = vpop.f32.mrf.mxu0
    %1456 = vmatprep.mubr.bf16.mxu0 0
    %1457 = vmatmul.mubr.bf16.gmra.mxu0 %v1219
    %v1458 = vpop.f32.mrf.mxu0
    %v1459 = vadd.f32 %v1138, %v1458
    %v1460 = vpop.f32.mrf.mxu0
    %v1461 = vpop.f32.mrf.mxu0
    %v1462 = vadd.f32 %v1138, %v1461
    %v1463 = vpop.f32.mrf.mxu0
    %1464 = vmatprep.mubr.bf16.mxu0 0
    %1465 = vmatmul.mubr.bf16.gmra.mxu0 %v1222
    %v1466 = vpop.f32.mrf.mxu0
    %v1467 = vadd.f32 %v1138, %v1466
    %v1468 = vpop.f32.mrf.mxu0
    %v1469 = vpop.f32.mrf.mxu0
    %v1470 = vadd.f32 %v1138, %v1469
    %v1471 = vpop.f32.mrf.mxu0
    %1472 = vmatprep.mubr.bf16.mxu0 0
    %1473 = vmatmul.mubr.bf16.gmra.mxu0 %v1225
    %v1474 = vpop.f32.mrf.mxu0
    %v1475 = vadd.f32 %v1138, %v1474
    %v1476 = vpop.f32.mrf.mxu0
    %v1477 = vpop.f32.mrf.mxu0
    %v1478 = vadd.f32 %v1138, %v1477
    %v1479 = vpop.f32.mrf.mxu0
    %1480 = vmatprep.mubr.bf16.mxu0 0
    %1481 = vmatmul.mubr.bf16.gmra.mxu0 %v1228
    %v1482 = vpop.f32.mrf.mxu0
    %v1483 = vadd.f32 %v1138, %v1482
    %v1484 = vpop.f32.mrf.mxu0
    %v1485 = vpop.f32.mrf.mxu0
    %v1486 = vadd.f32 %v1138, %v1485
    %v1487 = vpop.f32.mrf.mxu0
    %1488 = vmatprep.mubr.bf16.mxu0 0
    %1489 = vmatmul.mubr.bf16.gmra.mxu0 %v1231
    %v1490 = vpop.f32.mrf.mxu0
    %v1491 = vadd.f32 %v1138, %v1490
    %v1492 = vpop.f32.mrf.mxu0
    %v1493 = vpop.f32.mrf.mxu0
    %v1494 = vadd.f32 %v1138, %v1493
    %v1495 = vpop.f32.mrf.mxu0
    %1496 = vmatprep.mubr.bf16.mxu0 0
    %1497 = vmatmul.mubr.bf16.gmra.mxu0 %v1234
    %v1498 = vpop.f32.mrf.mxu0
    %v1499 = vadd.f32 %v1138, %v1498
    %v1500 = vpop.f32.mrf.mxu0
    %v1501 = vpop.f32.mrf.mxu0
    %v1502 = vadd.f32 %v1138, %v1501
    %v1503 = vpop.f32.mrf.mxu0
    %1504 = vmatprep.mubr.bf16.mxu0 0
    %1505 = vmatmul.mubr.bf16.gmra.mxu0 %v1237
    %v1506 = vpop.f32.mrf.mxu0
    %v1507 = vadd.f32 %v1138, %v1506
    %v1508 = vpop.f32.mrf.mxu0
    %v1509 = vpop.f32.mrf.mxu0
    %v1510 = vadd.f32 %v1138, %v1509
    %v1511 = vpop.f32.mrf.mxu0
    %1512 = vmatprep.mubr.bf16.mxu0 0
    %1513 = vmatmul.mubr.bf16.gmra.mxu0 %v1240
    %v1514 = vpop.f32.mrf.mxu0
    %v1515 = vadd.f32 %v1138, %v1514
    %v1516 = vpop.f32.mrf.mxu0
    %v1517 = vpop.f32.mrf.mxu0
    %v1518 = vadd.f32 %v1138, %v1517
    %v1519 = vpop.f32.mrf.mxu0
    %1520 = vmatprep.mubr.bf16.mxu0 0
    %1521 = vmatmul.mubr.bf16.gmra.mxu0 %v1243
    %v1522 = vpop.f32.mrf.mxu0
    %v1523 = vadd.f32 %v1138, %v1522
    %v1524 = vpop.f32.mrf.mxu0
    %v1525 = vpop.f32.mrf.mxu0
    %v1526 = vadd.f32 %v1138, %v1525
    %v1527 = vpop.f32.mrf.mxu0
    %1528 = vmatprep.mubr.bf16.mxu0 0
    %1529 = vmatmul.mubr.bf16.gmra.mxu0 %v1246
    %v1530 = vpop.f32.mrf.mxu0
    %v1531 = vadd.f32 %v1138, %v1530
    %v1532 = vpop.f32.mrf.mxu0
    %v1533 = vpop.f32.mrf.mxu0
    %v1534 = vadd.f32 %v1138, %v1533
    %v1535 = vpop.f32.mrf.mxu0
    %1536 = vdwg.mxu0
    %v1537 = vmax.f32 %v1283, 0.0
    %v1538 = vmax.f32 %v1286, 0.0
    %v1539 = vmax.f32 %v1291, 0.0
    %v1540 = vmax.f32 %v1294, 0.0
    %v1541 = vmax.f32 %v1299, 0.0
    %v1542 = vmax.f32 %v1302, 0.0
    %v1543 = vmax.f32 %v1307, 0.0
    %v1544 = vmax.f32 %v1310, 0.0
    %v1545 = vmax.f32 %v1315, 0.0
    %v1546 = vmax.f32 %v1318, 0.0
    %v1547 = vmax.f32 %v1323, 0.0
    %v1548 = vmax.f32 %v1326, 0.0
    %v1549 = vmax.f32 %v1331, 0.0
    %v1550 = vmax.f32 %v1334, 0.0
    %v1551 = vmax.f32 %v1339, 0.0
    %v1552 = vmax.f32 %v1342, 0.0
    %v1553 = vmax.f32 %v1347, 0.0
    %v1554 = vmax.f32 %v1350, 0.0
    %v1555 = vmax.f32 %v1355, 0.0
    %v1556 = vmax.f32 %v1358, 0.0
    %v1557 = vmax.f32 %v1363, 0.0
    %v1558 = vmax.f32 %v1366, 0.0
    %v1559 = vmax.f32 %v1371, 0.0
    %v1560 = vmax.f32 %v1374, 0.0
    %v1561 = vmax.f32 %v1379, 0.0
    %v1562 = vmax.f32 %v1382, 0.0
    %v1563 = vmax.f32 %v1387, 0.0
    %v1564 = vmax.f32 %v1390, 0.0
    %v1565 = vmax.f32 %v1395, 0.0
    %v1566 = vmax.f32 %v1398, 0.0
    %v1567 = vmax.f32 %v1403, 0.0
    %v1568 = vmax.f32 %v1406, 0.0
    %v1569 = vmax.f32 %v1411, 0.0
    %v1570 = vmax.f32 %v1414, 0.0
    %v1571 = vmax.f32 %v1419, 0.0
    %v1572 = vmax.f32 %v1422, 0.0
    %v1573 = vmax.f32 %v1427, 0.0
    %v1574 = vmax.f32 %v1430, 0.0
    %v1575 = vmax.f32 %v1435, 0.0
    %v1576 = vmax.f32 %v1438, 0.0
    %v1577 = vmax.f32 %v1443, 0.0
    %v1578 = vmax.f32 %v1446, 0.0
    %v1579 = vmax.f32 %v1451, 0.0
    %v1580 = vmax.f32 %v1454, 0.0
    %v1581 = vmax.f32 %v1459, 0.0
    %v1582 = vmax.f32 %v1462, 0.0
    %v1583 = vmax.f32 %v1467, 0.0
    %v1584 = vmax.f32 %v1470, 0.0
    %v1585 = vmax.f32 %v1475, 0.0
    %v1586 = vmax.f32 %v1478, 0.0
    %v1587 = vmax.f32 %v1483, 0.0
    %v1588 = vmax.f32 %v1486, 0.0
    %v1589 = vmax.f32 %v1491, 0.0
    %v1590 = vmax.f32 %v1494, 0.0
    %v1591 = vmax.f32 %v1499, 0.0
    %v1592 = vmax.f32 %v1502, 0.0
    %v1593 = vmax.f32 %v1507, 0.0
    %v1594 = vmax.f32 %v1510, 0.0
    %v1595 = vmax.f32 %v1515, 0.0
    %v1596 = vmax.f32 %v1518, 0.0
    %v1597 = vmax.f32 %v1523, 0.0
    %v1598 = vmax.f32 %v1526, 0.0
    %v1599 = vmax.f32 %v1531, 0.0
    %v1600 = vmax.f32 %v1534, 0.0
    %v1601 = vld [vmem:[%s7] sm:$0xf]
    %v1602 = vld [vmem:[%s7 + $0x4] sm:$0xf]
    %v1603 = vld [vmem:[%s7 + $0x8] sm:$0xf]
    %v1604 = vld [vmem:[%s7 + $0xc] sm:$0xf]
    %v1605 = vpack.c.bf16 %v1538, %v1537
    %v1606 = vpack.c.bf16 %v1540, %v1539
    %v1607 = vpack.c.bf16 %v1542, %v1541
    %v1608 = vpack.c.bf16 %v1544, %v1543
    %v1609 = vpack.c.bf16 %v1546, %v1545
    %v1610 = vpack.c.bf16 %v1548, %v1547
    %v1611 = vpack.c.bf16 %v1550, %v1549
    %v1612 = vpack.c.bf16 %v1552, %v1551
    %v1613 = vpack.c.bf16 %v1554, %v1553
    %v1614 = vpack.c.bf16 %v1556, %v1555
    %v1615 = vpack.c.bf16 %v1558, %v1557
    %v1616 = vpack.c.bf16 %v1560, %v1559
    %v1617 = vpack.c.bf16 %v1562, %v1561
    %v1618 = vpack.c.bf16 %v1564, %v1563
    %v1619 = vpack.c.bf16 %v1566, %v1565
    %v1620 = vpack.c.bf16 %v1568, %v1567
    %v1621 = vpack.c.bf16 %v1570, %v1569
    %v1622 = vpack.c.bf16 %v1572, %v1571
    %v1623 = vpack.c.bf16 %v1574, %v1573
    %v1624 = vpack.c.bf16 %v1576, %v1575
    %v1625 = vpack.c.bf16 %v1578, %v1577
    %v1626 = vpack.c.bf16 %v1580, %v1579
    %v1627 = vpack.c.bf16 %v1582, %v1581
    %v1628 = vpack.c.bf16 %v1584, %v1583
    %v1629 = vpack.c.bf16 %v1586, %v1585
    %v1630 = vpack.c.bf16 %v1588, %v1587
    %v1631 = vpack.c.bf16 %v1590, %v1589
    %v1632 = vpack.c.bf16 %v1592, %v1591
    %v1633 = vpack.c.bf16 %v1594, %v1593
    %v1634 = vpack.c.bf16 %v1596, %v1595
    %v1635 = vpack.c.bf16 %v1598, %v1597
    %v1636 = vpack.c.bf16 %v1600, %v1599
    %v1637 = vld [vmem:[%s8] sm:$0x1]
    %v1639 = vlaneseq
    %v1640 = vshrl.u32 %v1639, 7
    %v1641 = vsub.s32 0, %v1640
    %v1642 = vrot.slane %v1637, %v1641
    %v1648 = vunpack.c.l.b16 %v1601
    %v1649 = vunpack.c.l.b16 %v1602
    %v1650 = vunpack.c.l.b16 %v1603
    %v1651 = vunpack.c.l.b16 %v1604
    %v1652 = vpack.c.b16 %v1649, %v1648
    %v1653 = vpack.c.b16 %v1651, %v1650
    %v1657 = vsel %vm647, %v1605, 0
    %v1660 = vsel %vm647, %v1606, 0
    %v1663 = vsel %vm647, %v1607, 0
    %v1666 = vsel %vm647, %v1608, 0
    %v1669 = vsel %vm647, %v1609, 0
    %v1672 = vsel %vm647, %v1610, 0
    %v1675 = vsel %vm647, %v1611, 0
    %v1678 = vsel %vm647, %v1612, 0
    %v1681 = vsel %vm647, %v1613, 0
    %v1684 = vsel %vm647, %v1614, 0
    %v1687 = vsel %vm647, %v1615, 0
    %v1690 = vsel %vm647, %v1616, 0
    %v1693 = vsel %vm647, %v1617, 0
    %v1696 = vsel %vm647, %v1618, 0
    %v1699 = vsel %vm647, %v1619, 0
    %v1702 = vsel %vm647, %v1620, 0
    %v1705 = vsel %vm647, %v1621, 0
    %v1708 = vsel %vm647, %v1622, 0
    %v1711 = vsel %vm647, %v1623, 0
    %v1714 = vsel %vm647, %v1624, 0
    %v1717 = vsel %vm647, %v1625, 0
    %v1720 = vsel %vm647, %v1626, 0
    %v1723 = vsel %vm647, %v1627, 0
    %v1726 = vsel %vm647, %v1628, 0
    %v1729 = vsel %vm647, %v1629, 0
    %v1732 = vsel %vm647, %v1630, 0
    %v1735 = vsel %vm647, %v1631, 0
    %v1738 = vsel %vm647, %v1632, 0
    %v1741 = vsel %vm647, %v1633, 0
    %v1744 = vsel %vm647, %v1634, 0
    %v1747 = vsel %vm647, %v1635, 0
    %v1750 = vsel %vm647, %v1636, 0
    %1752 = vmatprep.subr.bf16.mxu0 0
    %1753 = vmatpush1.bf16.msra.mxu0 0
    %1754 = vmatprep.subr.bf16.mxu0 0
    %1755 = vmatpush1.bf16.msra.mxu0 0
    %1756 = vmatprep.subr.bf16.mxu0 0
    %1757 = vmatpush1.bf16.msra.mxu0 0
    %1758 = vmatprep.subr.bf16.mxu0 0
    %1759 = vmatpush1.bf16.msra.mxu0 0
    %1760 = vmatprep.subr.bf16.mxu0 0
    %1761 = vmatpush1.bf16.msra.mxu0 0
    %1762 = vmatprep.subr.bf16.mxu0 0
    %1763 = vmatpush1.bf16.msra.mxu0 0
    %1764 = vmatprep.subr.bf16.mxu0 0
    %1765 = vmatpush1.bf16.msra.mxu0 %v1653
    %1766 = vmatprep.subr.bf16.mxu0 0
    %1767 = vmatpush1.bf16.msra.mxu0 %v1652
    %1768 = vmatprep.subr.bf16.mxu0 0
    %1769 = vmatpush2.bf16.msra.mxu0 0
    %1770 = vmatprep.subr.bf16.mxu0 0
    %1771 = vmatpush2.bf16.msra.mxu0 0
    %1772 = vmatprep.subr.bf16.mxu0 0
    %1773 = vmatpush2.bf16.msra.mxu0 0
    %1774 = vmatprep.subr.bf16.mxu0 0
    %1775 = vmatpush2.bf16.msra.mxu0 0
    %1776 = vmatprep.subr.bf16.mxu0 0
    %1777 = vmatpush2.bf16.msra.mxu0 0
    %1778 = vmatprep.subr.bf16.mxu0 0
    %1779 = vmatpush2.bf16.msra.mxu0 0
    %1780 = vmatprep.subr.bf16.mxu0 0
    %1781 = vmatpush2.bf16.msra.mxu0 0
    %1782 = vmatprep.subr.bf16.mxu0 0
    %1783 = vmatpush2.bf16.msra.mxu0 0
    %1784 = vmatprep.mubr.bf16.mxu0 0
    %1785 = vmatmul.mubr.bf16.gmra.mxu0 %v1657
    %v1786 = vpop.f32.mrf.mxu0
    %v1787 = vadd.f32 %v1642, %v1786
    %v1788 = vpop.f32.mrf.mxu0
    %v1789 = vpop.f32.mrf.mxu0
    %v1790 = vadd.f32 %v1642, %v1789
    %v1791 = vpop.f32.mrf.mxu0
    %1792 = vmatprep.mubr.bf16.mxu0 0
    %1793 = vmatmul.mubr.bf16.gmra.mxu0 %v1660
    %v1794 = vpop.f32.mrf.mxu0
    %v1795 = vadd.f32 %v1642, %v1794
    %v1796 = vpop.f32.mrf.mxu0
    %v1797 = vpop.f32.mrf.mxu0
    %v1798 = vadd.f32 %v1642, %v1797
    %v1799 = vpop.f32.mrf.mxu0
    %1800 = vmatprep.mubr.bf16.mxu0 0
    %1801 = vmatmul.mubr.bf16.gmra.mxu0 %v1663
    %v1802 = vpop.f32.mrf.mxu0
    %v1803 = vadd.f32 %v1642, %v1802
    %v1804 = vpop.f32.mrf.mxu0
    %v1805 = vpop.f32.mrf.mxu0
    %v1806 = vadd.f32 %v1642, %v1805
    %v1807 = vpop.f32.mrf.mxu0
    %1808 = vmatprep.mubr.bf16.mxu0 0
    %1809 = vmatmul.mubr.bf16.gmra.mxu0 %v1666
    %v1810 = vpop.f32.mrf.mxu0
    %v1811 = vadd.f32 %v1642, %v1810
    %v1812 = vpop.f32.mrf.mxu0
    %v1813 = vpop.f32.mrf.mxu0
    %v1814 = vadd.f32 %v1642, %v1813
    %v1815 = vpop.f32.mrf.mxu0
    %1816 = vmatprep.mubr.bf16.mxu0 0
    %1817 = vmatmul.mubr.bf16.gmra.mxu0 %v1669
    %v1818 = vpop.f32.mrf.mxu0
    %v1819 = vadd.f32 %v1642, %v1818
    %v1820 = vpop.f32.mrf.mxu0
    %v1821 = vpop.f32.mrf.mxu0
    %v1822 = vadd.f32 %v1642, %v1821
    %v1823 = vpop.f32.mrf.mxu0
    %1824 = vmatprep.mubr.bf16.mxu0 0
    %1825 = vmatmul.mubr.bf16.gmra.mxu0 %v1672
    %v1826 = vpop.f32.mrf.mxu0
    %v1827 = vadd.f32 %v1642, %v1826
    %v1828 = vpop.f32.mrf.mxu0
    %v1829 = vpop.f32.mrf.mxu0
    %v1830 = vadd.f32 %v1642, %v1829
    %v1831 = vpop.f32.mrf.mxu0
    %1832 = vmatprep.mubr.bf16.mxu0 0
    %1833 = vmatmul.mubr.bf16.gmra.mxu0 %v1675
    %v1834 = vpop.f32.mrf.mxu0
    %v1835 = vadd.f32 %v1642, %v1834
    %v1836 = vpop.f32.mrf.mxu0
    %v1837 = vpop.f32.mrf.mxu0
    %v1838 = vadd.f32 %v1642, %v1837
    %v1839 = vpop.f32.mrf.mxu0
    %1840 = vmatprep.mubr.bf16.mxu0 0
    %1841 = vmatmul.mubr.bf16.gmra.mxu0 %v1678
    %v1842 = vpop.f32.mrf.mxu0
    %v1843 = vadd.f32 %v1642, %v1842
    %v1844 = vpop.f32.mrf.mxu0
    %v1845 = vpop.f32.mrf.mxu0
    %v1846 = vadd.f32 %v1642, %v1845
    %v1847 = vpop.f32.mrf.mxu0
    %1848 = vmatprep.mubr.bf16.mxu0 0
    %1849 = vmatmul.mubr.bf16.gmra.mxu0 %v1681
    %v1850 = vpop.f32.mrf.mxu0
    %v1851 = vadd.f32 %v1642, %v1850
    %v1852 = vpop.f32.mrf.mxu0
    %v1853 = vpop.f32.mrf.mxu0
    %v1854 = vadd.f32 %v1642, %v1853
    %v1855 = vpop.f32.mrf.mxu0
    %1856 = vmatprep.mubr.bf16.mxu0 0
    %1857 = vmatmul.mubr.bf16.gmra.mxu0 %v1684
    %v1858 = vpop.f32.mrf.mxu0
    %v1859 = vadd.f32 %v1642, %v1858
    %v1860 = vpop.f32.mrf.mxu0
    %v1861 = vpop.f32.mrf.mxu0
    %v1862 = vadd.f32 %v1642, %v1861
    %v1863 = vpop.f32.mrf.mxu0
    %1864 = vmatprep.mubr.bf16.mxu0 0
    %1865 = vmatmul.mubr.bf16.gmra.mxu0 %v1687
    %v1866 = vpop.f32.mrf.mxu0
    %v1867 = vadd.f32 %v1642, %v1866
    %v1868 = vpop.f32.mrf.mxu0
    %v1869 = vpop.f32.mrf.mxu0
    %v1870 = vadd.f32 %v1642, %v1869
    %v1871 = vpop.f32.mrf.mxu0
    %1872 = vmatprep.mubr.bf16.mxu0 0
    %1873 = vmatmul.mubr.bf16.gmra.mxu0 %v1690
    %v1874 = vpop.f32.mrf.mxu0
    %v1875 = vadd.f32 %v1642, %v1874
    %v1876 = vpop.f32.mrf.mxu0
    %v1877 = vpop.f32.mrf.mxu0
    %v1878 = vadd.f32 %v1642, %v1877
    %v1879 = vpop.f32.mrf.mxu0
    %1880 = vmatprep.mubr.bf16.mxu0 0
    %1881 = vmatmul.mubr.bf16.gmra.mxu0 %v1693
    %v1882 = vpop.f32.mrf.mxu0
    %v1883 = vadd.f32 %v1642, %v1882
    %v1884 = vpop.f32.mrf.mxu0
    %v1885 = vpop.f32.mrf.mxu0
    %v1886 = vadd.f32 %v1642, %v1885
    %v1887 = vpop.f32.mrf.mxu0
    %1888 = vmatprep.mubr.bf16.mxu0 0
    %1889 = vmatmul.mubr.bf16.gmra.mxu0 %v1696
    %v1890 = vpop.f32.mrf.mxu0
    %v1891 = vadd.f32 %v1642, %v1890
    %v1892 = vpop.f32.mrf.mxu0
    %v1893 = vpop.f32.mrf.mxu0
    %v1894 = vadd.f32 %v1642, %v1893
    %v1895 = vpop.f32.mrf.mxu0
    %1896 = vmatprep.mubr.bf16.mxu0 0
    %1897 = vmatmul.mubr.bf16.gmra.mxu0 %v1699
    %v1898 = vpop.f32.mrf.mxu0
    %v1899 = vadd.f32 %v1642, %v1898
    %v1900 = vpop.f32.mrf.mxu0
    %v1901 = vpop.f32.mrf.mxu0
    %v1902 = vadd.f32 %v1642, %v1901
    %v1903 = vpop.f32.mrf.mxu0
    %1904 = vmatprep.mubr.bf16.mxu0 0
    %1905 = vmatmul.mubr.bf16.gmra.mxu0 %v1702
    %v1906 = vpop.f32.mrf.mxu0
    %v1907 = vadd.f32 %v1642, %v1906
    %v1908 = vpop.f32.mrf.mxu0
    %v1909 = vpop.f32.mrf.mxu0
    %v1910 = vadd.f32 %v1642, %v1909
    %v1911 = vpop.f32.mrf.mxu0
    %1912 = vmatprep.mubr.bf16.mxu0 0
    %1913 = vmatmul.mubr.bf16.gmra.mxu0 %v1705
    %v1914 = vpop.f32.mrf.mxu0
    %v1915 = vadd.f32 %v1642, %v1914
    %v1916 = vpop.f32.mrf.mxu0
    %v1917 = vpop.f32.mrf.mxu0
    %v1918 = vadd.f32 %v1642, %v1917
    %v1919 = vpop.f32.mrf.mxu0
    %1920 = vmatprep.mubr.bf16.mxu0 0
    %1921 = vmatmul.mubr.bf16.gmra.mxu0 %v1708
    %v1922 = vpop.f32.mrf.mxu0
    %v1923 = vadd.f32 %v1642, %v1922
    %v1924 = vpop.f32.mrf.mxu0
    %v1925 = vpop.f32.mrf.mxu0
    %v1926 = vadd.f32 %v1642, %v1925
    %v1927 = vpop.f32.mrf.mxu0
    %1928 = vmatprep.mubr.bf16.mxu0 0
    %1929 = vmatmul.mubr.bf16.gmra.mxu0 %v1711
    %v1930 = vpop.f32.mrf.mxu0
    %v1931 = vadd.f32 %v1642, %v1930
    %v1932 = vpop.f32.mrf.mxu0
    %v1933 = vpop.f32.mrf.mxu0
    %v1934 = vadd.f32 %v1642, %v1933
    %v1935 = vpop.f32.mrf.mxu0
    %1936 = vmatprep.mubr.bf16.mxu0 0
    %1937 = vmatmul.mubr.bf16.gmra.mxu0 %v1714
    %v1938 = vpop.f32.mrf.mxu0
    %v1939 = vadd.f32 %v1642, %v1938
    %v1940 = vpop.f32.mrf.mxu0
    %v1941 = vpop.f32.mrf.mxu0
    %v1942 = vadd.f32 %v1642, %v1941
    %v1943 = vpop.f32.mrf.mxu0
    %1944 = vmatprep.mubr.bf16.mxu0 0
    %1945 = vmatmul.mubr.bf16.gmra.mxu0 %v1717
    %v1946 = vpop.f32.mrf.mxu0
    %v1947 = vadd.f32 %v1642, %v1946
    %v1948 = vpop.f32.mrf.mxu0
    %v1949 = vpop.f32.mrf.mxu0
    %v1950 = vadd.f32 %v1642, %v1949
    %v1951 = vpop.f32.mrf.mxu0
    %1952 = vmatprep.mubr.bf16.mxu0 0
    %1953 = vmatmul.mubr.bf16.gmra.mxu0 %v1720
    %v1954 = vpop.f32.mrf.mxu0
    %v1955 = vadd.f32 %v1642, %v1954
    %v1956 = vpop.f32.mrf.mxu0
    %v1957 = vpop.f32.mrf.mxu0
    %v1958 = vadd.f32 %v1642, %v1957
    %v1959 = vpop.f32.mrf.mxu0
    %1960 = vmatprep.mubr.bf16.mxu0 0
    %1961 = vmatmul.mubr.bf16.gmra.mxu0 %v1723
    %v1962 = vpop.f32.mrf.mxu0
    %v1963 = vadd.f32 %v1642, %v1962
    %v1964 = vpop.f32.mrf.mxu0
    %v1965 = vpop.f32.mrf.mxu0
    %v1966 = vadd.f32 %v1642, %v1965
    %v1967 = vpop.f32.mrf.mxu0
    %1968 = vmatprep.mubr.bf16.mxu0 0
    %1969 = vmatmul.mubr.bf16.gmra.mxu0 %v1726
    %v1970 = vpop.f32.mrf.mxu0
    %v1971 = vadd.f32 %v1642, %v1970
    %v1972 = vpop.f32.mrf.mxu0
    %v1973 = vpop.f32.mrf.mxu0
    %v1974 = vadd.f32 %v1642, %v1973
    %v1975 = vpop.f32.mrf.mxu0
    %1976 = vmatprep.mubr.bf16.mxu0 0
    %1977 = vmatmul.mubr.bf16.gmra.mxu0 %v1729
    %v1978 = vpop.f32.mrf.mxu0
    %v1979 = vadd.f32 %v1642, %v1978
    %v1980 = vpop.f32.mrf.mxu0
    %v1981 = vpop.f32.mrf.mxu0
    %v1982 = vadd.f32 %v1642, %v1981
    %v1983 = vpop.f32.mrf.mxu0
    %1984 = vmatprep.mubr.bf16.mxu0 0
    %1985 = vmatmul.mubr.bf16.gmra.mxu0 %v1732
    %v1986 = vpop.f32.mrf.mxu0
    %v1987 = vadd.f32 %v1642, %v1986
    %v1988 = vpop.f32.mrf.mxu0
    %v1989 = vpop.f32.mrf.mxu0
    %v1990 = vadd.f32 %v1642, %v1989
    %v1991 = vpop.f32.mrf.mxu0
    %1992 = vmatprep.mubr.bf16.mxu0 0
    %1993 = vmatmul.mubr.bf16.gmra.mxu0 %v1735
    %v1994 = vpop.f32.mrf.mxu0
    %v1995 = vadd.f32 %v1642, %v1994
    %v1996 = vpop.f32.mrf.mxu0
    %v1997 = vpop.f32.mrf.mxu0
    %v1998 = vadd.f32 %v1642, %v1997
    %v1999 = vpop.f32.mrf.mxu0
    %2000 = vmatprep.mubr.bf16.mxu0 0
    %2001 = vmatmul.mubr.bf16.gmra.mxu0 %v1738
    %v2002 = vpop.f32.mrf.mxu0
    %v2003 = vadd.f32 %v1642, %v2002
    %v2004 = vpop.f32.mrf.mxu0
    %v2005 = vpop.f32.mrf.mxu0
    %v2006 = vadd.f32 %v1642, %v2005
    %v2007 = vpop.f32.mrf.mxu0
    %2008 = vmatprep.mubr.bf16.mxu0 0
    %2009 = vmatmul.mubr.bf16.gmra.mxu0 %v1741
    %v2010 = vpop.f32.mrf.mxu0
    %v2011 = vadd.f32 %v1642, %v2010
    %v2012 = vpop.f32.mrf.mxu0
    %v2013 = vpop.f32.mrf.mxu0
    %v2014 = vadd.f32 %v1642, %v2013
    %v2015 = vpop.f32.mrf.mxu0
    %2016 = vmatprep.mubr.bf16.mxu0 0
    %2017 = vmatmul.mubr.bf16.gmra.mxu0 %v1744
    %v2018 = vpop.f32.mrf.mxu0
    %v2019 = vadd.f32 %v1642, %v2018
    %v2020 = vpop.f32.mrf.mxu0
    %v2021 = vpop.f32.mrf.mxu0
    %v2022 = vadd.f32 %v1642, %v2021
    %v2023 = vpop.f32.mrf.mxu0
    %2024 = vmatprep.mubr.bf16.mxu0 0
    %2025 = vmatmul.mubr.bf16.gmra.mxu0 %v1747
    %v2026 = vpop.f32.mrf.mxu0
    %v2027 = vadd.f32 %v1642, %v2026
    %v2028 = vpop.f32.mrf.mxu0
    %v2029 = vpop.f32.mrf.mxu0
    %v2030 = vadd.f32 %v1642, %v2029
    %v2031 = vpop.f32.mrf.mxu0
    %2032 = vmatprep.mubr.bf16.mxu0 0
    %2033 = vmatmul.mubr.bf16.gmra.mxu0 %v1750
    %v2034 = vpop.f32.mrf.mxu0
    %v2035 = vadd.f32 %v1642, %v2034
    %v2036 = vpop.f32.mrf.mxu0
    %v2037 = vpop.f32.mrf.mxu0
    %v2038 = vadd.f32 %v1642, %v2037
    %v2039 = vpop.f32.mrf.mxu0
    %2040 = vdwg.mxu0
    %v2041 = vlaneseq
    %v2042 = vand.u32 %v2041, 127
    %vm2043 = vcmp.eq.s32.totalorder %v2042, 2
    %v2044 = vxor.u32 %v1787, 2147483648
    %v2045 = vxor.u32 %v1790, 2147483648
    %v2046 = vxor.u32 %v1795, 2147483648
    %v2047 = vxor.u32 %v1798, 2147483648
    %v2048 = vxor.u32 %v1803, 2147483648
    %v2049 = vxor.u32 %v1806, 2147483648
    %v2050 = vxor.u32 %v1811, 2147483648
    %v2051 = vxor.u32 %v1814, 2147483648
    %v2052 = vxor.u32 %v1819, 2147483648
    %v2053 = vxor.u32 %v1822, 2147483648
    %v2054 = vxor.u32 %v1827, 2147483648
    %v2055 = vxor.u32 %v1830, 2147483648
    %v2056 = vxor.u32 %v1835, 2147483648
    %v2057 = vxor.u32 %v1838, 2147483648
    %v2058 = vxor.u32 %v1843, 2147483648
    %v2059 = vxor.u32 %v1846, 2147483648
    %v2060 = vxor.u32 %v1851, 2147483648
    %v2061 = vxor.u32 %v1854, 2147483648
    %v2062 = vxor.u32 %v1859, 2147483648
    %v2063 = vxor.u32 %v1862, 2147483648
    %v2064 = vxor.u32 %v1867, 2147483648
    %v2065 = vxor.u32 %v1870, 2147483648
    %v2066 = vxor.u32 %v1875, 2147483648
    %v2067 = vxor.u32 %v1878, 2147483648
    %v2068 = vxor.u32 %v1883, 2147483648
    %v2069 = vxor.u32 %v1886, 2147483648
    %v2070 = vxor.u32 %v1891, 2147483648
    %v2071 = vxor.u32 %v1894, 2147483648
    %v2072 = vxor.u32 %v1899, 2147483648
    %v2073 = vxor.u32 %v1902, 2147483648
    %v2074 = vxor.u32 %v1907, 2147483648
    %v2075 = vxor.u32 %v1910, 2147483648
    %v2076 = vxor.u32 %v1915, 2147483648
    %v2077 = vxor.u32 %v1918, 2147483648
    %v2078 = vxor.u32 %v1923, 2147483648
    %v2079 = vxor.u32 %v1926, 2147483648
    %v2080 = vxor.u32 %v1931, 2147483648
    %v2081 = vxor.u32 %v1934, 2147483648
    %v2082 = vxor.u32 %v1939, 2147483648
    %v2083 = vxor.u32 %v1942, 2147483648
    %v2084 = vxor.u32 %v1947, 2147483648
    %v2085 = vxor.u32 %v1950, 2147483648
    %v2086 = vxor.u32 %v1955, 2147483648
    %v2087 = vxor.u32 %v1958, 2147483648
    %v2088 = vxor.u32 %v1963, 2147483648
    %v2089 = vxor.u32 %v1966, 2147483648
    %v2090 = vxor.u32 %v1971, 2147483648
    %v2091 = vxor.u32 %v1974, 2147483648
    %v2092 = vxor.u32 %v1979, 2147483648
    %v2093 = vxor.u32 %v1982, 2147483648
    %v2094 = vxor.u32 %v1987, 2147483648
    %v2095 = vxor.u32 %v1990, 2147483648
    %v2096 = vxor.u32 %v1995, 2147483648
    %v2097 = vxor.u32 %v1998, 2147483648
    %v2098 = vxor.u32 %v2003, 2147483648
    %v2099 = vxor.u32 %v2006, 2147483648
    %v2100 = vxor.u32 %v2011, 2147483648
    %v2101 = vxor.u32 %v2014, 2147483648
    %v2102 = vxor.u32 %v2019, 2147483648
    %v2103 = vxor.u32 %v2022, 2147483648
    %v2104 = vxor.u32 %v2027, 2147483648
    %v2105 = vxor.u32 %v2030, 2147483648
    %v2106 = vxor.u32 %v2035, 2147483648
    %v2107 = vxor.u32 %v2038, 2147483648
    %v2108 = vmul.f32 %v2044, 1.442695
    %v2109 = vpow.pop %v2108
    %v2110 = vmul.f32 %v2045, 1.442695
    %v2111 = vpow.pop %v2110
    %v2112 = vmul.f32 %v2046, 1.442695
    %v2113 = vpow.pop %v2112
    %v2114 = vmul.f32 %v2047, 1.442695
    %v2115 = vpow.pop %v2114
    %v2116 = vmul.f32 %v2048, 1.442695
    %v2117 = vpow.pop %v2116
    %v2118 = vmul.f32 %v2049, 1.442695
    %v2119 = vpow.pop %v2118
    %v2120 = vmul.f32 %v2050, 1.442695
    %v2121 = vpow.pop %v2120
    %v2122 = vmul.f32 %v2051, 1.442695
    %v2123 = vpow.pop %v2122
    %v2124 = vmul.f32 %v2052, 1.442695
    %v2125 = vpow.pop %v2124
    %v2126 = vmul.f32 %v2053, 1.442695
    %v2127 = vpow.pop %v2126
    %v2128 = vmul.f32 %v2054, 1.442695
    %v2129 = vpow.pop %v2128
    %v2130 = vmul.f32 %v2055, 1.442695
    %v2131 = vpow.pop %v2130
    %v2132 = vmul.f32 %v2056, 1.442695
    %v2133 = vpow.pop %v2132
    %v2134 = vmul.f32 %v2057, 1.442695
    %v2135 = vpow.pop %v2134
    %v2136 = vmul.f32 %v2058, 1.442695
    %v2137 = vpow.pop %v2136
    %v2138 = vmul.f32 %v2059, 1.442695
    %v2139 = vpow.pop %v2138
    %v2140 = vmul.f32 %v2060, 1.442695
    %v2141 = vpow.pop %v2140
    %v2142 = vmul.f32 %v2061, 1.442695
    %v2143 = vpow.pop %v2142
    %v2144 = vmul.f32 %v2062, 1.442695
    %v2145 = vpow.pop %v2144
    %v2146 = vmul.f32 %v2063, 1.442695
    %v2147 = vpow.pop %v2146
    %v2148 = vmul.f32 %v2064, 1.442695
    %v2149 = vpow.pop %v2148
    %v2150 = vmul.f32 %v2065, 1.442695
    %v2151 = vpow.pop %v2150
    %v2152 = vmul.f32 %v2066, 1.442695
    %v2153 = vpow.pop %v2152
    %v2154 = vmul.f32 %v2067, 1.442695
    %v2155 = vpow.pop %v2154
    %v2156 = vmul.f32 %v2068, 1.442695
    %v2157 = vpow.pop %v2156
    %v2158 = vmul.f32 %v2069, 1.442695
    %v2159 = vpow.pop %v2158
    %v2160 = vmul.f32 %v2070, 1.442695
    %v2161 = vpow.pop %v2160
    %v2162 = vmul.f32 %v2071, 1.442695
    %v2163 = vpow.pop %v2162
    %v2164 = vmul.f32 %v2072, 1.442695
    %v2165 = vpow.pop %v2164
    %v2166 = vmul.f32 %v2073, 1.442695
    %v2167 = vpow.pop %v2166
    %v2168 = vmul.f32 %v2074, 1.442695
    %v2169 = vpow.pop %v2168
    %v2170 = vmul.f32 %v2075, 1.442695
    %v2171 = vpow.pop %v2170
    %v2172 = vmul.f32 %v2076, 1.442695
    %v2173 = vpow.pop %v2172
    %v2174 = vmul.f32 %v2077, 1.442695
    %v2175 = vpow.pop %v2174
    %v2176 = vmul.f32 %v2078, 1.442695
    %v2177 = vpow.pop %v2176
    %v2178 = vmul.f32 %v2079, 1.442695
    %v2179 = vpow.pop %v2178
    %v2180 = vmul.f32 %v2080, 1.442695
    %v2181 = vpow.pop %v2180
    %v2182 = vmul.f32 %v2081, 1.442695
    %v2183 = vpow.pop %v2182
    %v2184 = vmul.f32 %v2082, 1.442695
    %v2185 = vpow.pop %v2184
    %v2186 = vmul.f32 %v2083, 1.442695
    %v2187 = vpow.pop %v2186
    %v2188 = vmul.f32 %v2084, 1.442695
    %v2189 = vpow.pop %v2188
    %v2190 = vmul.f32 %v2085, 1.442695
    %v2191 = vpow.pop %v2190
    %v2192 = vmul.f32 %v2086, 1.442695
    %v2193 = vpow.pop %v2192
    %v2194 = vmul.f32 %v2087, 1.442695
    %v2195 = vpow.pop %v2194
    %v2196 = vmul.f32 %v2088, 1.442695
    %v2197 = vpow.pop %v2196
    %v2198 = vmul.f32 %v2089, 1.442695
    %v2199 = vpow.pop %v2198
    %v2200 = vmul.f32 %v2090, 1.442695
    %v2201 = vpow.pop %v2200
    %v2202 = vmul.f32 %v2091, 1.442695
    %v2203 = vpow.pop %v2202
    %v2204 = vmul.f32 %v2092, 1.442695
    %v2205 = vpow.pop %v2204
    %v2206 = vmul.f32 %v2093, 1.442695
    %v2207 = vpow.pop %v2206
    %v2208 = vmul.f32 %v2094, 1.442695
    %v2209 = vpow.pop %v2208
    %v2210 = vmul.f32 %v2095, 1.442695
    %v2211 = vpow.pop %v2210
    %v2212 = vmul.f32 %v2096, 1.442695
    %v2213 = vpow.pop %v2212
    %v2214 = vmul.f32 %v2097, 1.442695
    %v2215 = vpow.pop %v2214
    %v2216 = vmul.f32 %v2098, 1.442695
    %v2217 = vpow.pop %v2216
    %v2218 = vmul.f32 %v2099, 1.442695
    %v2219 = vpow.pop %v2218
    %v2220 = vmul.f32 %v2100, 1.442695
    %v2221 = vpow.pop %v2220
    %v2222 = vmul.f32 %v2101, 1.442695
    %v2223 = vpow.pop %v2222
    %v2224 = vmul.f32 %v2102, 1.442695
    %v2225 = vpow.pop %v2224
    %v2226 = vmul.f32 %v2103, 1.442695
    %v2227 = vpow.pop %v2226
    %v2228 = vmul.f32 %v2104, 1.442695
    %v2229 = vpow.pop %v2228
    %v2230 = vmul.f32 %v2105, 1.442695
    %v2231 = vpow.pop %v2230
    %v2232 = vmul.f32 %v2106, 1.442695
    %v2233 = vpow.pop %v2232
    %v2234 = vmul.f32 %v2107, 1.442695
    %v2235 = vpow.pop %v2234
    %v2236 = vadd.f32 %v2109, 1.0
    %v2237 = vadd.f32 %v2111, 1.0
    %v2238 = vadd.f32 %v2113, 1.0
    %v2239 = vadd.f32 %v2115, 1.0
    %v2240 = vadd.f32 %v2117, 1.0
    %v2241 = vadd.f32 %v2119, 1.0
    %v2242 = vadd.f32 %v2121, 1.0
    %v2243 = vadd.f32 %v2123, 1.0
    %v2244 = vadd.f32 %v2125, 1.0
    %v2245 = vadd.f32 %v2127, 1.0
    %v2246 = vadd.f32 %v2129, 1.0
    %v2247 = vadd.f32 %v2131, 1.0
    %v2248 = vadd.f32 %v2133, 1.0
    %v2249 = vadd.f32 %v2135, 1.0
    %v2250 = vadd.f32 %v2137, 1.0
    %v2251 = vadd.f32 %v2139, 1.0
    %v2252 = vadd.f32 %v2141, 1.0
    %v2253 = vadd.f32 %v2143, 1.0
    %v2254 = vadd.f32 %v2145, 1.0
    %v2255 = vadd.f32 %v2147, 1.0
    %v2256 = vadd.f32 %v2149, 1.0
    %v2257 = vadd.f32 %v2151, 1.0
    %v2258 = vadd.f32 %v2153, 1.0
    %v2259 = vadd.f32 %v2155, 1.0
    %v2260 = vadd.f32 %v2157, 1.0
    %v2261 = vadd.f32 %v2159, 1.0
    %v2262 = vadd.f32 %v2161, 1.0
    %v2263 = vadd.f32 %v2163, 1.0
    %v2264 = vadd.f32 %v2165, 1.0
    %v2265 = vadd.f32 %v2167, 1.0
    %v2266 = vadd.f32 %v2169, 1.0
    %v2267 = vadd.f32 %v2171, 1.0
    %v2268 = vadd.f32 %v2173, 1.0
    %v2269 = vadd.f32 %v2175, 1.0
    %v2270 = vadd.f32 %v2177, 1.0
    %v2271 = vadd.f32 %v2179, 1.0
    %v2272 = vadd.f32 %v2181, 1.0
    %v2273 = vadd.f32 %v2183, 1.0
    %v2274 = vadd.f32 %v2185, 1.0
    %v2275 = vadd.f32 %v2187, 1.0
    %v2276 = vadd.f32 %v2189, 1.0
    %v2277 = vadd.f32 %v2191, 1.0
    %v2278 = vadd.f32 %v2193, 1.0
    %v2279 = vadd.f32 %v2195, 1.0
    %v2280 = vadd.f32 %v2197, 1.0
    %v2281 = vadd.f32 %v2199, 1.0
    %v2282 = vadd.f32 %v2201, 1.0
    %v2283 = vadd.f32 %v2203, 1.0
    %v2284 = vadd.f32 %v2205, 1.0
    %v2285 = vadd.f32 %v2207, 1.0
    %v2286 = vadd.f32 %v2209, 1.0
    %v2287 = vadd.f32 %v2211, 1.0
    %v2288 = vadd.f32 %v2213, 1.0
    %v2289 = vadd.f32 %v2215, 1.0
    %v2290 = vadd.f32 %v2217, 1.0
    %v2291 = vadd.f32 %v2219, 1.0
    %v2292 = vadd.f32 %v2221, 1.0
    %v2293 = vadd.f32 %v2223, 1.0
    %v2294 = vadd.f32 %v2225, 1.0
    %v2295 = vadd.f32 %v2227, 1.0
    %v2296 = vadd.f32 %v2229, 1.0
    %v2297 = vadd.f32 %v2231, 1.0
    %v2298 = vadd.f32 %v2233, 1.0
    %v2299 = vadd.f32 %v2235, 1.0
    %v2300 = vrcp.pop %v2236
    %v2301 = vmul.f32 1.0, %v2300
    %v2302 = vrcp.pop %v2237
    %v2303 = vmul.f32 1.0, %v2302
    %v2304 = vrcp.pop %v2238
    %v2305 = vmul.f32 1.0, %v2304
    %v2306 = vrcp.pop %v2239
    %v2307 = vmul.f32 1.0, %v2306
    %v2308 = vrcp.pop %v2240
    %v2309 = vmul.f32 1.0, %v2308
    %v2310 = vrcp.pop %v2241
    %v2311 = vmul.f32 1.0, %v2310
    %v2312 = vrcp.pop %v2242
    %v2313 = vmul.f32 1.0, %v2312
    %v2314 = vrcp.pop %v2243
    %v2315 = vmul.f32 1.0, %v2314
    %v2316 = vrcp.pop %v2244
    %v2317 = vmul.f32 1.0, %v2316
    %v2318 = vrcp.pop %v2245
    %v2319 = vmul.f32 1.0, %v2318
    %v2320 = vrcp.pop %v2246
    %v2321 = vmul.f32 1.0, %v2320
    %v2322 = vrcp.pop %v2247
    %v2323 = vmul.f32 1.0, %v2322
    %v2324 = vrcp.pop %v2248
    %v2325 = vmul.f32 1.0, %v2324
    %v2326 = vrcp.pop %v2249
    %v2327 = vmul.f32 1.0, %v2326
    %v2328 = vrcp.pop %v2250
    %v2329 = vmul.f32 1.0, %v2328
    %v2330 = vrcp.pop %v2251
    %v2331 = vmul.f32 1.0, %v2330
    %v2332 = vrcp.pop %v2252
    %v2333 = vmul.f32 1.0, %v2332
    %v2334 = vrcp.pop %v2253
    %v2335 = vmul.f32 1.0, %v2334
    %v2336 = vrcp.pop %v2254
    %v2337 = vmul.f32 1.0, %v2336
    %v2338 = vrcp.pop %v2255
    %v2339 = vmul.f32 1.0, %v2338
    %v2340 = vrcp.pop %v2256
    %v2341 = vmul.f32 1.0, %v2340
    %v2342 = vrcp.pop %v2257
    %v2343 = vmul.f32 1.0, %v2342
    %v2344 = vrcp.pop %v2258
    %v2345 = vmul.f32 1.0, %v2344
    %v2346 = vrcp.pop %v2259
    %v2347 = vmul.f32 1.0, %v2346
    %v2348 = vrcp.pop %v2260
    %v2349 = vmul.f32 1.0, %v2348
    %v2350 = vrcp.pop %v2261
    %v2351 = vmul.f32 1.0, %v2350
    %v2352 = vrcp.pop %v2262
    %v2353 = vmul.f32 1.0, %v2352
    %v2354 = vrcp.pop %v2263
    %v2355 = vmul.f32 1.0, %v2354
    %v2356 = vrcp.pop %v2264
    %v2357 = vmul.f32 1.0, %v2356
    %v2358 = vrcp.pop %v2265
    %v2359 = vmul.f32 1.0, %v2358
    %v2360 = vrcp.pop %v2266
    %v2361 = vmul.f32 1.0, %v2360
    %v2362 = vrcp.pop %v2267
    %v2363 = vmul.f32 1.0, %v2362
    %v2364 = vrcp.pop %v2268
    %v2365 = vmul.f32 1.0, %v2364
    %v2366 = vrcp.pop %v2269
    %v2367 = vmul.f32 1.0, %v2366
    %v2368 = vrcp.pop %v2270
    %v2369 = vmul.f32 1.0, %v2368
    %v2370 = vrcp.pop %v2271
    %v2371 = vmul.f32 1.0, %v2370
    %v2372 = vrcp.pop %v2272
    %v2373 = vmul.f32 1.0, %v2372
    %v2374 = vrcp.pop %v2273
    %v2375 = vmul.f32 1.0, %v2374
    %v2376 = vrcp.pop %v2274
    %v2377 = vmul.f32 1.0, %v2376
    %v2378 = vrcp.pop %v2275
    %v2379 = vmul.f32 1.0, %v2378
    %v2380 = vrcp.pop %v2276
    %v2381 = vmul.f32 1.0, %v2380
    %v2382 = vrcp.pop %v2277
    %v2383 = vmul.f32 1.0, %v2382
    %v2384 = vrcp.pop %v2278
    %v2385 = vmul.f32 1.0, %v2384
    %v2386 = vrcp.pop %v2279
    %v2387 = vmul.f32 1.0, %v2386
    %v2388 = vrcp.pop %v2280
    %v2389 = vmul.f32 1.0, %v2388
    %v2390 = vrcp.pop %v2281
    %v2391 = vmul.f32 1.0, %v2390
    %v2392 = vrcp.pop %v2282
    %v2393 = vmul.f32 1.0, %v2392
    %v2394 = vrcp.pop %v2283
    %v2395 = vmul.f32 1.0, %v2394
    %v2396 = vrcp.pop %v2284
    %v2397 = vmul.f32 1.0, %v2396
    %v2398 = vrcp.pop %v2285
    %v2399 = vmul.f32 1.0, %v2398
    %v2400 = vrcp.pop %v2286
    %v2401 = vmul.f32 1.0, %v2400
    %v2402 = vrcp.pop %v2287
    %v2403 = vmul.f32 1.0, %v2402
    %v2404 = vrcp.pop %v2288
    %v2405 = vmul.f32 1.0, %v2404
    %v2406 = vrcp.pop %v2289
    %v2407 = vmul.f32 1.0, %v2406
    %v2408 = vrcp.pop %v2290
    %v2409 = vmul.f32 1.0, %v2408
    %v2410 = vrcp.pop %v2291
    %v2411 = vmul.f32 1.0, %v2410
    %v2412 = vrcp.pop %v2292
    %v2413 = vmul.f32 1.0, %v2412
    %v2414 = vrcp.pop %v2293
    %v2415 = vmul.f32 1.0, %v2414
    %v2416 = vrcp.pop %v2294
    %v2417 = vmul.f32 1.0, %v2416
    %v2418 = vrcp.pop %v2295
    %v2419 = vmul.f32 1.0, %v2418
    %v2420 = vrcp.pop %v2296
    %v2421 = vmul.f32 1.0, %v2420
    %v2422 = vrcp.pop %v2297
    %v2423 = vmul.f32 1.0, %v2422
    %v2424 = vrcp.pop %v2298
    %v2425 = vmul.f32 1.0, %v2424
    %v2426 = vrcp.pop %v2299
    %v2427 = vmul.f32 1.0, %v2426
    %v2428 = vsel %vm2043, %v2301, %v1787
    %v2429 = vsel %vm2043, %v2303, %v1790
    %v2430 = vsel %vm2043, %v2305, %v1795
    %v2431 = vsel %vm2043, %v2307, %v1798
    %v2432 = vsel %vm2043, %v2309, %v1803
    %v2433 = vsel %vm2043, %v2311, %v1806
    %v2434 = vsel %vm2043, %v2313, %v1811
    %v2435 = vsel %vm2043, %v2315, %v1814
    %v2436 = vsel %vm2043, %v2317, %v1819
    %v2437 = vsel %vm2043, %v2319, %v1822
    %v2438 = vsel %vm2043, %v2321, %v1827
    %v2439 = vsel %vm2043, %v2323, %v1830
    %v2440 = vsel %vm2043, %v2325, %v1835
    %v2441 = vsel %vm2043, %v2327, %v1838
    %v2442 = vsel %vm2043, %v2329, %v1843
    %v2443 = vsel %vm2043, %v2331, %v1846
    %v2444 = vsel %vm2043, %v2333, %v1851
    %v2445 = vsel %vm2043, %v2335, %v1854
    %v2446 = vsel %vm2043, %v2337, %v1859
    %v2447 = vsel %vm2043, %v2339, %v1862
    %v2448 = vsel %vm2043, %v2341, %v1867
    %v2449 = vsel %vm2043, %v2343, %v1870
    %v2450 = vsel %vm2043, %v2345, %v1875
    %v2451 = vsel %vm2043, %v2347, %v1878
    %v2452 = vsel %vm2043, %v2349, %v1883
    %v2453 = vsel %vm2043, %v2351, %v1886
    %v2454 = vsel %vm2043, %v2353, %v1891
    %v2455 = vsel %vm2043, %v2355, %v1894
    %v2456 = vsel %vm2043, %v2357, %v1899
    %v2457 = vsel %vm2043, %v2359, %v1902
    %v2458 = vsel %vm2043, %v2361, %v1907
    %v2459 = vsel %vm2043, %v2363, %v1910
    %v2460 = vsel %vm2043, %v2365, %v1915
    %v2461 = vsel %vm2043, %v2367, %v1918
    %v2462 = vsel %vm2043, %v2369, %v1923
    %v2463 = vsel %vm2043, %v2371, %v1926
    %v2464 = vsel %vm2043, %v2373, %v1931
    %v2465 = vsel %vm2043, %v2375, %v1934
    %v2466 = vsel %vm2043, %v2377, %v1939
    %v2467 = vsel %vm2043, %v2379, %v1942
    %v2468 = vsel %vm2043, %v2381, %v1947
    %v2469 = vsel %vm2043, %v2383, %v1950
    %v2470 = vsel %vm2043, %v2385, %v1955
    %v2471 = vsel %vm2043, %v2387, %v1958
    %v2472 = vsel %vm2043, %v2389, %v1963
    %v2473 = vsel %vm2043, %v2391, %v1966
    %v2474 = vsel %vm2043, %v2393, %v1971
    %v2475 = vsel %vm2043, %v2395, %v1974
    %v2476 = vsel %vm2043, %v2397, %v1979
    %v2477 = vsel %vm2043, %v2399, %v1982
    %v2478 = vsel %vm2043, %v2401, %v1987
    %v2479 = vsel %vm2043, %v2403, %v1990
    %v2480 = vsel %vm2043, %v2405, %v1995
    %v2481 = vsel %vm2043, %v2407, %v1998
    %v2482 = vsel %vm2043, %v2409, %v2003
    %v2483 = vsel %vm2043, %v2411, %v2006
    %v2484 = vsel %vm2043, %v2413, %v2011
    %v2485 = vsel %vm2043, %v2415, %v2014
    %v2486 = vsel %vm2043, %v2417, %v2019
    %v2487 = vsel %vm2043, %v2419, %v2022
    %v2488 = vsel %vm2043, %v2421, %v2027
    %v2489 = vsel %vm2043, %v2423, %v2030
    %v2490 = vsel %vm2043, %v2425, %v2035
    %v2491 = vsel %vm2043, %v2427, %v2038
    %v2492 = vpack.c.bf16 %v2429, %v2428
    %v2493 = vpack.c.bf16 %v2431, %v2430
    %v2494 = vpack.c.bf16 %v2433, %v2432
    %v2495 = vpack.c.bf16 %v2435, %v2434
    %v2496 = vpack.c.bf16 %v2437, %v2436
    %v2497 = vpack.c.bf16 %v2439, %v2438
    %v2498 = vpack.c.bf16 %v2441, %v2440
    %v2499 = vpack.c.bf16 %v2443, %v2442
    %v2500 = vpack.c.bf16 %v2445, %v2444
    %v2501 = vpack.c.bf16 %v2447, %v2446
    %v2502 = vpack.c.bf16 %v2449, %v2448
    %v2503 = vpack.c.bf16 %v2451, %v2450
    %v2504 = vpack.c.bf16 %v2453, %v2452
    %v2505 = vpack.c.bf16 %v2455, %v2454
    %v2506 = vpack.c.bf16 %v2457, %v2456
    %v2507 = vpack.c.bf16 %v2459, %v2458
    %v2508 = vpack.c.bf16 %v2461, %v2460
    %v2509 = vpack.c.bf16 %v2463, %v2462
    %v2510 = vpack.c.bf16 %v2465, %v2464
    %v2511 = vpack.c.bf16 %v2467, %v2466
    %v2512 = vpack.c.bf16 %v2469, %v2468
    %v2513 = vpack.c.bf16 %v2471, %v2470
    %v2514 = vpack.c.bf16 %v2473, %v2472
    %v2515 = vpack.c.bf16 %v2475, %v2474
    %v2516 = vpack.c.bf16 %v2477, %v2476
    %v2517 = vpack.c.bf16 %v2479, %v2478
    %v2518 = vpack.c.bf16 %v2481, %v2480
    %v2519 = vpack.c.bf16 %v2483, %v2482
    %v2520 = vpack.c.bf16 %v2485, %v2484
    %v2521 = vpack.c.bf16 %v2487, %v2486
    %v2522 = vpack.c.bf16 %v2489, %v2488
    %v2523 = vpack.c.bf16 %v2491, %v2490
    %v2556 = vunpack.c.l.b16 %v2492
    %v2557 = vunpack.c.h.b16 %v2492
    %v2558 = vunpack.c.l.b16 %v2493
    %v2559 = vunpack.c.h.b16 %v2493
    %v2560 = vunpack.c.l.b16 %v2494
    %v2561 = vunpack.c.h.b16 %v2494
    %v2562 = vunpack.c.l.b16 %v2495
    %v2563 = vunpack.c.h.b16 %v2495
    %v2564 = vunpack.c.l.b16 %v2496
    %v2565 = vunpack.c.h.b16 %v2496
    %v2566 = vunpack.c.l.b16 %v2497
    %v2567 = vunpack.c.h.b16 %v2497
    %v2568 = vunpack.c.l.b16 %v2498
    %v2569 = vunpack.c.h.b16 %v2498
    %v2570 = vunpack.c.l.b16 %v2499
    %v2571 = vunpack.c.h.b16 %v2499
    %v2572 = vunpack.c.l.b16 %v2500
    %v2573 = vunpack.c.h.b16 %v2500
    %v2574 = vunpack.c.l.b16 %v2501
    %v2575 = vunpack.c.h.b16 %v2501
    %v2576 = vunpack.c.l.b16 %v2502
    %v2577 = vunpack.c.h.b16 %v2502
    %v2578 = vunpack.c.l.b16 %v2503
    %v2579 = vunpack.c.h.b16 %v2503
    %v2580 = vunpack.c.l.b16 %v2504
    %v2581 = vunpack.c.h.b16 %v2504
    %v2582 = vunpack.c.l.b16 %v2505
    %v2583 = vunpack.c.h.b16 %v2505
    %v2584 = vunpack.c.l.b16 %v2506
    %v2585 = vunpack.c.h.b16 %v2506
    %v2586 = vunpack.c.l.b16 %v2507
    %v2587 = vunpack.c.h.b16 %v2507
    %v2588 = vunpack.c.l.b16 %v2508
    %v2589 = vunpack.c.h.b16 %v2508
    %v2590 = vunpack.c.l.b16 %v2509
    %v2591 = vunpack.c.h.b16 %v2509
    %v2592 = vunpack.c.l.b16 %v2510
    %v2593 = vunpack.c.h.b16 %v2510
    %v2594 = vunpack.c.l.b16 %v2511
    %v2595 = vunpack.c.h.b16 %v2511
    %v2596 = vunpack.c.l.b16 %v2512
    %v2597 = vunpack.c.h.b16 %v2512
    %v2598 = vunpack.c.l.b16 %v2513
    %v2599 = vunpack.c.h.b16 %v2513
    %v2600 = vunpack.c.l.b16 %v2514
    %v2601 = vunpack.c.h.b16 %v2514
    %v2602 = vunpack.c.l.b16 %v2515
    %v2603 = vunpack.c.h.b16 %v2515
    %v2604 = vunpack.c.l.b16 %v2516
    %v2605 = vunpack.c.h.b16 %v2516
    %v2606 = vunpack.c.l.b16 %v2517
    %v2607 = vunpack.c.h.b16 %v2517
    %v2608 = vunpack.c.l.b16 %v2518
    %v2609 = vunpack.c.h.b16 %v2518
    %v2610 = vunpack.c.l.b16 %v2519
    %v2611 = vunpack.c.h.b16 %v2519
    %v2612 = vunpack.c.l.b16 %v2520
    %v2613 = vunpack.c.h.b16 %v2520
    %v2614 = vunpack.c.l.b16 %v2521
    %v2615 = vunpack.c.h.b16 %v2521
    %v2616 = vunpack.c.l.b16 %v2522
    %v2617 = vunpack.c.h.b16 %v2522
    %v2618 = vunpack.c.l.b16 %v2523
    %v2619 = vunpack.c.h.b16 %v2523
    %v2620 = vpack.c.b16 %v2556, %v2556
    %v2621 = vpack.c.b16 %v2557, %v2557
    %v2622 = vpack.c.b16 %v2558, %v2558
    %v2623 = vpack.c.b16 %v2559, %v2559
    %v2624 = vpack.c.b16 %v2560, %v2560
    %v2625 = vpack.c.b16 %v2561, %v2561
    %v2626 = vpack.c.b16 %v2562, %v2562
    %v2627 = vpack.c.b16 %v2563, %v2563
    %v2628 = vpack.c.b16 %v2564, %v2564
    %v2629 = vpack.c.b16 %v2565, %v2565
    %v2630 = vpack.c.b16 %v2566, %v2566
    %v2631 = vpack.c.b16 %v2567, %v2567
    %v2632 = vpack.c.b16 %v2568, %v2568
    %v2633 = vpack.c.b16 %v2569, %v2569
    %v2634 = vpack.c.b16 %v2570, %v2570
    %v2635 = vpack.c.b16 %v2571, %v2571
    %v2636 = vpack.c.b16 %v2572, %v2572
    %v2637 = vpack.c.b16 %v2573, %v2573
    %v2638 = vpack.c.b16 %v2574, %v2574
    %v2639 = vpack.c.b16 %v2575, %v2575
    %v2640 = vpack.c.b16 %v2576, %v2576
    %v2641 = vpack.c.b16 %v2577, %v2577
    %v2642 = vpack.c.b16 %v2578, %v2578
    %v2643 = vpack.c.b16 %v2579, %v2579
    %v2644 = vpack.c.b16 %v2580, %v2580
    %v2645 = vpack.c.b16 %v2581, %v2581
    %v2646 = vpack.c.b16 %v2582, %v2582
    %v2647 = vpack.c.b16 %v2583, %v2583
    %v2648 = vpack.c.b16 %v2584, %v2584
    %v2649 = vpack.c.b16 %v2585, %v2585
    %v2650 = vpack.c.b16 %v2586, %v2586
    %v2651 = vpack.c.b16 %v2587, %v2587
    %v2652 = vpack.c.b16 %v2588, %v2588
    %v2653 = vpack.c.b16 %v2589, %v2589
    %v2654 = vpack.c.b16 %v2590, %v2590
    %v2655 = vpack.c.b16 %v2591, %v2591
    %v2656 = vpack.c.b16 %v2592, %v2592
    %v2657 = vpack.c.b16 %v2593, %v2593
    %v2658 = vpack.c.b16 %v2594, %v2594
    %v2659 = vpack.c.b16 %v2595, %v2595
    %v2660 = vpack.c.b16 %v2596, %v2596
    %v2661 = vpack.c.b16 %v2597, %v2597
    %v2662 = vpack.c.b16 %v2598, %v2598
    %v2663 = vpack.c.b16 %v2599, %v2599
    %v2664 = vpack.c.b16 %v2600, %v2600
    %v2665 = vpack.c.b16 %v2601, %v2601
    %v2666 = vpack.c.b16 %v2602, %v2602
    %v2667 = vpack.c.b16 %v2603, %v2603
    %v2668 = vpack.c.b16 %v2604, %v2604
    %v2669 = vpack.c.b16 %v2605, %v2605
    %v2670 = vpack.c.b16 %v2606, %v2606
    %v2671 = vpack.c.b16 %v2607, %v2607
    %v2672 = vpack.c.b16 %v2608, %v2608
    %v2673 = vpack.c.b16 %v2609, %v2609
    %v2674 = vpack.c.b16 %v2610, %v2610
    %v2675 = vpack.c.b16 %v2611, %v2611
    %v2676 = vpack.c.b16 %v2612, %v2612
    %v2677 = vpack.c.b16 %v2613, %v2613
    %v2678 = vpack.c.b16 %v2614, %v2614
    %v2679 = vpack.c.b16 %v2615, %v2615
    %v2680 = vpack.c.b16 %v2616, %v2616
    %v2681 = vpack.c.b16 %v2617, %v2617
    %v2682 = vpack.c.b16 %v2618, %v2618
    %v2683 = vpack.c.b16 %v2619, %v2619
    %2748 = vst [vmem:[#allocation2] sm:$0xf] %v2620
    %2749 = vst [vmem:[#allocation2 + $0x4] sm:$0xf] %v2621
    %2750 = vst [vmem:[#allocation2 + $0x8] sm:$0xf] %v2622
    %2751 = vst [vmem:[#allocation2 + $0xc] sm:$0xf] %v2623
    %2752 = vst [vmem:[#allocation2 + $0x10] sm:$0xf] %v2624
    %2753 = vst [vmem:[#allocation2 + $0x14] sm:$0xf] %v2625
    %2754 = vst [vmem:[#allocation2 + $0x18] sm:$0xf] %v2626
    %2755 = vst [vmem:[#allocation2 + $0x1c] sm:$0xf] %v2627
    %2756 = vst [vmem:[#allocation2 + $0x20] sm:$0xf] %v2628
    %2757 = vst [vmem:[#allocation2 + $0x24] sm:$0xf] %v2629
    %2758 = vst [vmem:[#allocation2 + $0x28] sm:$0xf] %v2630
    %2759 = vst [vmem:[#allocation2 + $0x2c] sm:$0xf] %v2631
    %2760 = vst [vmem:[#allocation2 + $0x30] sm:$0xf] %v2632
    %2761 = vst [vmem:[#allocation2 + $0x34] sm:$0xf] %v2633
    %2762 = vst [vmem:[#allocation2 + $0x38] sm:$0xf] %v2634
    %2763 = vst [vmem:[#allocation2 + $0x3c] sm:$0xf] %v2635
    %2764 = vst [vmem:[#allocation2 + $0x40] sm:$0xf] %v2636
    %2765 = vst [vmem:[#allocation2 + $0x44] sm:$0xf] %v2637
    %2766 = vst [vmem:[#allocation2 + $0x48] sm:$0xf] %v2638
    %2767 = vst [vmem:[#allocation2 + $0x4c] sm:$0xf] %v2639
    %2768 = vst [vmem:[#allocation2 + $0x50] sm:$0xf] %v2640
    %2769 = vst [vmem:[#allocation2 + $0x54] sm:$0xf] %v2641
    %2770 = vst [vmem:[#allocation2 + $0x58] sm:$0xf] %v2642
    %2771 = vst [vmem:[#allocation2 + $0x5c] sm:$0xf] %v2643
    %2772 = vst [vmem:[#allocation2 + $0x60] sm:$0xf] %v2644
    %2773 = vst [vmem:[#allocation2 + $0x64] sm:$0xf] %v2645
    %2774 = vst [vmem:[#allocation2 + $0x68] sm:$0xf] %v2646
    %2775 = vst [vmem:[#allocation2 + $0x6c] sm:$0xf] %v2647
    %2776 = vst [vmem:[#allocation2 + $0x70] sm:$0xf] %v2648
    %2777 = vst [vmem:[#allocation2 + $0x74] sm:$0xf] %v2649
    %2778 = vst [vmem:[#allocation2 + $0x78] sm:$0xf] %v2650
    %2779 = vst [vmem:[#allocation2 + $0x7c] sm:$0xf] %v2651
    %2780 = vst [vmem:[#allocation2 + $0x80] sm:$0xf] %v2652
    %2781 = vst [vmem:[#allocation2 + $0x84] sm:$0xf] %v2653
    %2782 = vst [vmem:[#allocation2 + $0x88] sm:$0xf] %v2654
    %2783 = vst [vmem:[#allocation2 + $0x8c] sm:$0xf] %v2655
    %2784 = vst [vmem:[#allocation2 + $0x90] sm:$0xf] %v2656
    %2785 = vst [vmem:[#allocation2 + $0x94] sm:$0xf] %v2657
    %2786 = vst [vmem:[#allocation2 + $0x98] sm:$0xf] %v2658
    %2787 = vst [vmem:[#allocation2 + $0x9c] sm:$0xf] %v2659
    %2788 = vst [vmem:[#allocation2 + $0xa0] sm:$0xf] %v2660
    %2789 = vst [vmem:[#allocation2 + $0xa4] sm:$0xf] %v2661
    %2790 = vst [vmem:[#allocation2 + $0xa8] sm:$0xf] %v2662
    %2791 = vst [vmem:[#allocation2 + $0xac] sm:$0xf] %v2663
    %2792 = vst [vmem:[#allocation2 + $0xb0] sm:$0xf] %v2664
    %2793 = vst [vmem:[#allocation2 + $0xb4] sm:$0xf] %v2665
    %2794 = vst [vmem:[#allocation2 + $0xb8] sm:$0xf] %v2666
    %2795 = vst [vmem:[#allocation2 + $0xbc] sm:$0xf] %v2667
    %2796 = vst [vmem:[#allocation2 + $0xc0] sm:$0xf] %v2668
    %2797 = vst [vmem:[#allocation2 + $0xc4] sm:$0xf] %v2669
    %2798 = vst [vmem:[#allocation2 + $0xc8] sm:$0xf] %v2670
    %2799 = vst [vmem:[#allocation2 + $0xcc] sm:$0xf] %v2671
    %2800 = vst [vmem:[#allocation2 + $0xd0] sm:$0xf] %v2672
    %2801 = vst [vmem:[#allocation2 + $0xd4] sm:$0xf] %v2673
    %2802 = vst [vmem:[#allocation2 + $0xd8] sm:$0xf] %v2674
    %2803 = vst [vmem:[#allocation2 + $0xdc] sm:$0xf] %v2675
    %2804 = vst [vmem:[#allocation2 + $0xe0] sm:$0xf] %v2676
    %2805 = vst [vmem:[#allocation2 + $0xe4] sm:$0xf] %v2677
    %2806 = vst [vmem:[#allocation2 + $0xe8] sm:$0xf] %v2678
    %2807 = vst [vmem:[#allocation2 + $0xec] sm:$0xf] %v2679
    %2808 = vst [vmem:[#allocation2 + $0xf0] sm:$0xf] %v2680
    %2809 = vst [vmem:[#allocation2 + $0xf4] sm:$0xf] %v2681
    %2810 = vst [vmem:[#allocation2 + $0xf8] sm:$0xf] %v2682
    %2811 = vst [vmem:[#allocation2 + $0xfc] sm:$0xf] %v2683
    // Predicated region
    $region38: #{tpu_custom_call.1} parent=1 // pred_check
      _
    $region39: #{tpu_custom_call.1} parent=1 // pred_check_branch
      %2813 = sbr.rel (0) target = $region41
    $region40: #{tpu_custom_call.1} parent=1 // pred_region
      %s2815 = ssub.s32 4096, 4096
      %2816 = vsyncadd [#allocation3], %s2815
      %s2817 = sshll.u32 [#allocation2], 4
      %s2818 = int_to_ptr.vmem [resolvable:$true] %s2817
      %2823 = dma.vmem_to_hbm [thread:$0]  %s2818, 4096, %s9, [#allocation3], 64, 64, 4
    $region41: #{tpu_custom_call.1} parent=1 // pred_fallthru
      _
    // Predicated region
    $region42: #{tpu_custom_call.1} parent=1 // pred_check
      _
    $region43: #{tpu_custom_call.1} parent=1 // pred_check_branch
      %2825 = sbr.rel (0) target = $region45
    $region44: #{tpu_custom_call.1} parent=1 // pred_region
      %2826 = dma.done [#allocation3], 4096
    $region45: #{tpu_custom_call.1} parent=1 // pred_fallthru
      _
    %2827 = vsyncpa [#allocation3], 1

</llo_original>
